<compile_context>
chip_gen: v6e
topology: v6e:2x2x1
jax: 0.10.0
libtpu: 0.0.40
codegen_flags: <defaults>
</compile_context>

<pallas_src>
import functools
import math

import jax
import jax.numpy as jnp
from jax import lax
from jax.experimental import pallas as pl
from jax.experimental.pallas import tpu as pltpu  # noqa: F401

# ----------------------------- problem sizes --------------------------------
B = 2          # batch
C = 4          # latent channels
H = 16         # latent height
W = 16         # latent width
L = 8          # text sequence length
D = 32         # cross_attention_dim
E = 64         # clip_embeddings_dim
T = 4          # clip_extra_context_tokens (num ip tokens)
Cm = 32        # surrogate UNet model width
S = L + T      # total conditioning tokens per batch element
HW = H * W

# --------------------------- parameter slab layout ---------------------------
# One f32 (SLAB_ROWS, 128) buffer, DMA'd once, sliced statically in-kernel.
_R_PROJ_W = 0                 # rows 0:64   lanes 0:128  image-proj Linear weight (E, T*D)
_R_PROJ_B = 64                # row  64     lanes 0:128  image-proj bias (T*D,)
_R_LN_G = 65                  # row  65     lanes 0:128  LayerNorm gamma tiled T times
_R_LN_B = 66                  # row  66     lanes 0:128  LayerNorm beta  tiled T times
_R_HB0 = 67                   # row  67     lanes 0:Cm   conv_in_b + time_b
_R_TIME_W = 72                # rows 72:104 lanes 0:Cm   time embedding Linear weight
_R_WQ = 104                   # rows 104:136 lanes 0:Cm  attention Q weight
_R_WKV = 136                  # rows 136:168 lanes 0:2Cm fused K|V weight (K half pre-scaled)
_R_WQEFF = 168                # rows 168:172 lanes 0:Cm  conv_in_w @ wq ; lanes Cm:Cm+C = conv_out_w @ conv_in_w^T
_R_OUT_W = 172                # rows 172:176 lanes 0:Cm  conv_out weight ; lane Cm = conv_out bias
_R_MAVG = 176                 # rows 176:304 lanes 0:128 block-diag group-averaging matrix for LN
SLAB_ROWS = _R_MAVG + T * D   # 304


# ------------------------- single fused forward kernel -----------------------
def _ip_adapter_kernel(slab_ref, x_ref, enc_ref, imgp_ref, o_ref):
    # slab_ref: (SLAB_ROWS, 128)  all parameters, one DMA
    # x_ref:    (B*C, HW)         noisy latents (NCHW flattened, free reshape)
    # enc_ref:  (B*L, D)          text encoder hidden states (flattened)
    # imgp_ref: (B, E + Cm)       [clip image embeds | sinusoidal time embedding]
    # o_ref:    (B*C, HW)         noise prediction, channel-major, lane-dense
    f32 = jnp.float32

    # ---- unpack parameter slab (static ref slices; no extra DMAs)
    proj_w = slab_ref[_R_PROJ_W:_R_PROJ_W + E, :]            # (E, T*D)
    proj_b = slab_ref[_R_PROJ_B:_R_PROJ_B + 1, :]            # (1, T*D)
    gamma_t = slab_ref[_R_LN_G:_R_LN_G + 1, :]               # (1, T*D)
    beta_t = slab_ref[_R_LN_B:_R_LN_B + 1, :]                # (1, T*D)
    hb0 = slab_ref[_R_HB0:_R_HB0 + 1, 0:Cm]                  # (1, Cm)
    time_w = slab_ref[_R_TIME_W:_R_TIME_W + Cm, 0:Cm]        # (Cm, Cm)
    wq = slab_ref[_R_WQ:_R_WQ + Cm, 0:Cm]                    # (Cm, Cm)
    wkv = slab_ref[_R_WKV:_R_WKV + D, 0:2 * Cm]              # (D, 2*Cm), K pre-scaled
    wq_eff = slab_ref[_R_WQEFF:_R_WQEFF + C, 0:Cm]           # (C, Cm)  = conv_in_w @ wq
    wres = slab_ref[_R_WQEFF:_R_WQEFF + C, Cm:Cm + C]        # (C, C)   = conv_out_w @ conv_in_w^T
    out_w = slab_ref[_R_OUT_W:_R_OUT_W + C, 0:Cm]            # (C, Cm)
    out_b = slab_ref[_R_OUT_W:_R_OUT_W + C, Cm:Cm + 1]       # (C, 1)
    m_avg = slab_ref[_R_MAVG:_R_MAVG + T * D, :]             # (T*D, T*D) block-diag averaging

    img = imgp_ref[:, 0:E]                                   # (B, E)
    temb_sin = imgp_ref[:, E:E + Cm]                          # (B, Cm)

    # ---- image_proj_model: Linear(E, T*D) + grouped LayerNorm, fully in lane
    # layout (no in-kernel reshape); per-group mean/var via one block-diagonal
    # averaging matmul each (MXU is otherwise idle here).
    proj = jnp.dot(img, proj_w, preferred_element_type=f32) + proj_b   # (B, T*D)
    mu = jnp.dot(proj, m_avg, preferred_element_type=f32)              # broadcasted group means
    xc = proj - mu
    var = jnp.dot(xc * xc, m_avg, preferred_element_type=f32)          # broadcasted group vars
    ip_lane = xc * lax.rsqrt(var + 1e-5) * gamma_t + beta_t            # (B, T*D)

    # ---- stacked conditioning tokens (built once) + single fused K|V dot
    tok_parts = []
    for b in range(B):
        tok_parts.append(enc_ref[b * L:(b + 1) * L, :])                # (L, D)
        for t in range(T):
            tok_parts.append(ip_lane[b:b + 1, t * D:(t + 1) * D])      # (1, D)
    tokens = jnp.concatenate(tok_parts, axis=0)                        # (B*S, D)
    kv = jnp.dot(tokens, wkv, preferred_element_type=f32)              # (B*S, 2*Cm)

    # ---- time-conditioned bias terms, shared across the batch loop
    hb = jnp.dot(temb_sin, time_w, preferred_element_type=f32) + hb0   # (B, Cm)  conv_in_b+time_b+temb
    qb = jnp.dot(hb, wq, preferred_element_type=f32)                   # (B, Cm)  bias of the Q path
    hres = lax.dot_general(out_w, hb, (((1,), (1,)), ((), ())),
                           preferred_element_type=f32)                 # (C, B)   conv_out of the bias

    # ---- per-batch attention + output (B=2 statically unrolled; all large
    # intermediates are lane-dense so vreg pressure stays low)
    outs = []
    for b in range(B):
        x_b = x_ref[b * C:(b + 1) * C, :]                              # (C, HW)
        k_b = kv[b * S:(b + 1) * S, 0:Cm]                              # (S, Cm), scale folded in
        v_b = kv[b * S:(b + 1) * S, Cm:2 * Cm]                         # (S, Cm)

        # Q kept feature-major (Cm, HW): unmasked vregs, score dot is a plain matmul.
        qT = lax.dot_general(wq_eff, x_b, (((0,), (0,)), ((), ())),
                             preferred_element_type=f32)               # (Cm, HW)
        kqb = lax.dot_general(k_b, qb[b:b + 1, :], (((1,), (1,)), ((), ())),
                              preferred_element_type=f32)              # (S, 1)  K·(q bias)

        s = jnp.dot(k_b, qT, preferred_element_type=f32) + kqb         # (S, HW) lane-dense scores
        s = s - jnp.max(s, axis=0, keepdims=True)
        p = jnp.exp(s)
        p = p * pl.reciprocal(jnp.sum(p, axis=0, keepdims=True),
                              approx=False)                            # exact EUP reciprocal

        # conv_out folded: out = Wres·x + (out_w·V^T)·P + out_w·h_bias + out_b
        wv = lax.dot_general(out_w, v_b, (((1,), (1,)), ((), ())),
                             preferred_element_type=f32)               # (C, S)
        o_b = (jnp.dot(wres, x_b, preferred_element_type=f32)
               + jnp.dot(wv, p, preferred_element_type=f32)
               + hres[:, b:b + 1] + out_b)                             # (C, HW)
        outs.append(o_b.astype(o_ref.dtype))

    # single (B*C, HW) = (8, 256) unmasked, (8,128)-aligned store
    o_ref[...] = jnp.concatenate(outs, axis=0)


# ----------------------------- parameters ------------------------------------
def init_params(key):
    ks = jax.random.split(key, 8)
    raw = {}
    # image_proj_model: Linear(E, T*D) + LayerNorm(D)
    raw["proj_w"] = jax.random.normal(ks[0], (E, T * D), jnp.float32) * 0.02
    raw["proj_b"] = jnp.zeros((T * D,), jnp.float32)
    raw["ln_g"] = jnp.ones((D,), jnp.float32)
    raw["ln_b"] = jnp.zeros((D,), jnp.float32)
    # surrogate UNet
    raw["conv_in_w"] = jax.random.normal(ks[1], (C, Cm), jnp.float32) * 0.1   # (in_c, out_c)
    raw["conv_in_b"] = jnp.zeros((Cm,), jnp.float32)
    raw["time_w"] = jax.random.normal(ks[2], (Cm, Cm), jnp.float32) * 0.05
    raw["time_b"] = jnp.zeros((Cm,), jnp.float32)
    raw["wq"] = jax.random.normal(ks[3], (Cm, Cm), jnp.float32) * 0.05
    raw["wk"] = jax.random.normal(ks[4], (D, Cm), jnp.float32) * 0.05
    raw["wv"] = jax.random.normal(ks[5], (D, Cm), jnp.float32) * 0.05
    raw["conv_out_w"] = jax.random.normal(ks[6], (C, Cm), jnp.float32) * 0.05  # (out_c, in_c)
    raw["conv_out_b"] = jnp.zeros((C,), jnp.float32)

    scale = 1.0 / math.sqrt(Cm)
    group = jnp.arange(T * D) // D
    m_avg = (group[:, None] == group[None, :]).astype(jnp.float32) / D        # block-diag averaging

    slab = jnp.zeros((SLAB_ROWS, 128), jnp.float32)
    slab = slab.at[_R_PROJ_W:_R_PROJ_W + E, :].set(raw["proj_w"])
    slab = slab.at[_R_PROJ_B, :].set(raw["proj_b"])
    slab = slab.at[_R_LN_G, :].set(jnp.tile(raw["ln_g"], T))
    slab = slab.at[_R_LN_B, :].set(jnp.tile(raw["ln_b"], T))
    slab = slab.at[_R_HB0, 0:Cm].set(raw["conv_in_b"] + raw["time_b"])
    slab = slab.at[_R_TIME_W:_R_TIME_W + Cm, 0:Cm].set(raw["time_w"])
    slab = slab.at[_R_WQ:_R_WQ + Cm, 0:Cm].set(raw["wq"])
    slab = slab.at[_R_WKV:_R_WKV + D, 0:Cm].set(raw["wk"] * scale)            # scale folded into K
    slab = slab.at[_R_WKV:_R_WKV + D, Cm:2 * Cm].set(raw["wv"])
    slab = slab.at[_R_WQEFF:_R_WQEFF + C, 0:Cm].set(raw["conv_in_w"] @ raw["wq"])
    slab = slab.at[_R_WQEFF:_R_WQEFF + C, Cm:Cm + C].set(raw["conv_out_w"] @ raw["conv_in_w"].T)
    slab = slab.at[_R_OUT_W:_R_OUT_W + C, 0:Cm].set(raw["conv_out_w"])
    slab = slab.at[_R_OUT_W:_R_OUT_W + C, Cm].set(raw["conv_out_b"])
    slab = slab.at[_R_MAVG:_R_MAVG + T * D, :].set(m_avg)
    return {"slab": slab, "raw": raw}


# ------------------------------- forward --------------------------------------
def ip_adapter_forward(slab, noisy_latents, timesteps, encoder_hidden_states,
                       image_embeds):
    b, c, h, w = noisy_latents.shape
    l = encoder_hidden_states.shape[1]

    x2d = noisy_latents.reshape(b * c, h * w)                     # free reshape (stays NCHW order)
    enc2d = encoder_hidden_states.reshape(b * l, encoder_hidden_states.shape[2])

    # sinusoidal timestep embedding (tiny; packed into the image-embedding DMA)
    half = Cm // 2
    freqs = jnp.exp(-math.log(10000.0) * jnp.arange(half, dtype=jnp.float32) / half)
    args = timesteps.astype(jnp.float32)[:, None] * freqs[None, :]
    img_pack = jnp.concatenate(
        [image_embeds, jnp.sin(args), jnp.cos(args)], axis=-1)   # (B, E + Cm)

    out = pl.pallas_call(
        _ip_adapter_kernel,
        out_shape=jax.ShapeDtypeStruct((b * c, h * w), jnp.float32),
    )(slab, x2d, enc2d, img_pack)

    return out.reshape(b, c, h, w)                                # free reshape back to NCHW


# ----------------------- plain-JAX reference (unfused) ------------------------
def _reference_forward(raw, noisy_latents, timesteps, enc, img):
    b, c, h, w = noisy_latents.shape
    half = Cm // 2
    freqs = jnp.exp(-math.log(10000.0) * jnp.arange(half, dtype=jnp.float32) / half)
    args = timesteps.astype(jnp.float32)[:, None] * freqs[None, :]
    temb_sin = jnp.concatenate([jnp.sin(args), jnp.cos(args)], axis=-1)      # (B, Cm)

    proj = img @ raw["proj_w"] + raw["proj_b"]                               # (B, T*D)
    ip = proj.reshape(b, T, D)
    mu = ip.mean(-1, keepdims=True)
    var = ((ip - mu) ** 2).mean(-1, keepdims=True)
    ip = (ip - mu) * jax.lax.rsqrt(var + 1e-5) * raw["ln_g"] + raw["ln_b"]
    tokens = jnp.concatenate([enc, ip], axis=1)                              # (B, S, D)

    temb = temb_sin @ raw["time_w"] + raw["time_b"]                          # (B, Cm)
    x = noisy_latents.reshape(b, c, h * w)
    feat = jnp.einsum("bcx,cm->bxm", x, raw["conv_in_w"])
    hid = feat + raw["conv_in_b"][None, None, :] + temb[:, None, :]
    q = hid @ raw["wq"]
    k = tokens @ raw["wk"]
    v = tokens @ raw["wv"]
    s = jnp.einsum("bxm,bsm->bxs", q, k) / math.sqrt(Cm)
    p = jax.nn.softmax(s, axis=-1)
    attn = jnp.einsum("bxs,bsm->bxm", p, v)
    out_feat = hid + attn
    out = (jnp.einsum("cm,bxm->bcx", raw["conv_out_w"], out_feat)
           + raw["conv_out_b"][None, :, None])
    return out.reshape(b, c, h, w)


# --------------------------------- main ----------------------------------------
if __name__ == "__main__":
    key = jax.random.PRNGKey(0)
    k1, k2, k3, kp = jax.random.split(key, 4)

    noisy_latents = jax.random.normal(k1, (B, C, H, W), jnp.float32)         # NCHW
    timesteps = jnp.array([10, 500], dtype=jnp.int32)                         # (B,)
    encoder_hidden_states = jax.random.normal(k2, (B, L, D), jnp.float32)     # (B, L, D)
    image_embeds = jax.random.normal(k3, (B, E), jnp.float32)                 # (B, E)

    params = init_params(kp)

    fwd = jax.jit(functools.partial(ip_adapter_forward, params["slab"]))
    noise_pred = fwd(noisy_latents, timesteps, encoder_hidden_states, image_embeds)
    jax.block_until_ready(noise_pred)

    assert noise_pred.shape == noisy_latents.shape
    assert noise_pred.dtype == jnp.float32

    ref = _reference_forward(params["raw"], noisy_latents, timesteps,
                             encoder_hidden_states, image_embeds)
    max_err = float(jnp.max(jnp.abs(noise_pred - ref)))
    assert max_err < 1e-3, f"kernel/reference mismatch: {max_err}"

    print("KERNEL_OK")
</pallas_src>

<mosaic_0001>
module attributes {stable_mosaic.version = 11 : i64} {
  func.func @_ip_adapter_kernel(%arg0: memref<304x128xf32, #tpu.memory_space<vmem>>, %arg1: memref<8x256xf32, #tpu.memory_space<vmem>>, %arg2: memref<16x32xf32, #tpu.memory_space<vmem>>, %arg3: memref<2x96xf32, #tpu.memory_space<vmem>>, %arg4: memref<8x256xf32, #tpu.memory_space<vmem>>) attributes {dimension_semantics = [], scalar_prefetch = 0 : i64, scratch_operands = 0 : i64, tpu.core_type = #tpu.core_type<tc>} {
    %c0 = arith.constant 0 : index
    %c0_0 = arith.constant 0 : index
    %0 = vector.load %arg0[%c0, %c0_0] : memref<304x128xf32, #tpu.memory_space<vmem>>, vector<64x128xf32>
    %c64 = arith.constant 64 : index
    %c0_1 = arith.constant 0 : index
    %1 = vector.load %arg0[%c64, %c0_1] : memref<304x128xf32, #tpu.memory_space<vmem>>, vector<1x128xf32>
    %c65 = arith.constant 65 : index
    %c0_2 = arith.constant 0 : index
    %2 = vector.load %arg0[%c65, %c0_2] : memref<304x128xf32, #tpu.memory_space<vmem>>, vector<1x128xf32>
    %c66 = arith.constant 66 : index
    %c0_3 = arith.constant 0 : index
    %3 = vector.load %arg0[%c66, %c0_3] : memref<304x128xf32, #tpu.memory_space<vmem>>, vector<1x128xf32>
    %c67 = arith.constant 67 : index
    %c0_4 = arith.constant 0 : index
    %4 = vector.load %arg0[%c67, %c0_4] : memref<304x128xf32, #tpu.memory_space<vmem>>, vector<1x32xf32>
    %c72 = arith.constant 72 : index
    %c0_5 = arith.constant 0 : index
    %5 = vector.load %arg0[%c72, %c0_5] : memref<304x128xf32, #tpu.memory_space<vmem>>, vector<32x32xf32>
    %c104 = arith.constant 104 : index
    %c0_6 = arith.constant 0 : index
    %6 = vector.load %arg0[%c104, %c0_6] : memref<304x128xf32, #tpu.memory_space<vmem>>, vector<32x32xf32>
    %c136 = arith.constant 136 : index
    %c0_7 = arith.constant 0 : index
    %7 = vector.load %arg0[%c136, %c0_7] : memref<304x128xf32, #tpu.memory_space<vmem>>, vector<32x64xf32>
    %c168 = arith.constant 168 : index
    %c0_8 = arith.constant 0 : index
    %8 = vector.load %arg0[%c168, %c0_8] : memref<304x128xf32, #tpu.memory_space<vmem>>, vector<4x32xf32>
    %c168_9 = arith.constant 168 : index
    %c32 = arith.constant 32 : index
    %9 = vector.load %arg0[%c168_9, %c32] : memref<304x128xf32, #tpu.memory_space<vmem>>, vector<4x4xf32>
    %c172 = arith.constant 172 : index
    %c0_10 = arith.constant 0 : index
    %10 = vector.load %arg0[%c172, %c0_10] : memref<304x128xf32, #tpu.memory_space<vmem>>, vector<4x32xf32>
    %c172_11 = arith.constant 172 : index
    %c32_12 = arith.constant 32 : index
    %11 = vector.load %arg0[%c172_11, %c32_12] : memref<304x128xf32, #tpu.memory_space<vmem>>, vector<4x1xf32>
    %c176 = arith.constant 176 : index
    %c0_13 = arith.constant 0 : index
    %12 = vector.load %arg0[%c176, %c0_13] : memref<304x128xf32, #tpu.memory_space<vmem>>, vector<128x128xf32>
    %c0_14 = arith.constant 0 : index
    %c0_15 = arith.constant 0 : index
    %13 = vector.load %arg3[%c0_14, %c0_15] : memref<2x96xf32, #tpu.memory_space<vmem>>, vector<2x64xf32>
    %c0_16 = arith.constant 0 : index
    %c64_17 = arith.constant 64 : index
    %14 = vector.load %arg3[%c0_16, %c64_17] : memref<2x96xf32, #tpu.memory_space<vmem>>, vector<2x32xf32>
    %cst = arith.constant dense<0.000000e+00> : vector<2x128xf32>
    %15 = tpu.matmul %13, %0, %cst {dimension_numbers = #tpu.dot_dimension_numbers<[1], [0], [0], [1], [0, 0, 1, 1], [], []>} : vector<2x64xf32>, vector<64x128xf32>, vector<2x128xf32> -> vector<2x128xf32>
    %16 = vector.broadcast %1 : vector<1x128xf32> to vector<2x128xf32>
    %17 = arith.addf %15, %16 : vector<2x128xf32>
    %cst_18 = arith.constant dense<0.000000e+00> : vector<2x128xf32>
    %18 = tpu.matmul %17, %12, %cst_18 {dimension_numbers = #tpu.dot_dimension_numbers<[1], [0], [0], [1], [0, 0, 1, 1], [], []>} : vector<2x128xf32>, vector<128x128xf32>, vector<2x128xf32> -> vector<2x128xf32>
    %19 = arith.subf %17, %18 : vector<2x128xf32>
    %20 = arith.mulf %19, %19 : vector<2x128xf32>
    %cst_19 = arith.constant dense<0.000000e+00> : vector<2x128xf32>
    %21 = tpu.matmul %20, %12, %cst_19 {dimension_numbers = #tpu.dot_dimension_numbers<[1], [0], [0], [1], [0, 0, 1, 1], [], []>} : vector<2x128xf32>, vector<128x128xf32>, vector<2x128xf32> -> vector<2x128xf32>
    %cst_20 = arith.constant 9.99999974E-6 : f32
    %22 = vector.broadcast %cst_20 : f32 to vector<2x128xf32>
    %23 = arith.addf %21, %22 : vector<2x128xf32>
    %24 = math.rsqrt %23 : vector<2x128xf32>
    %25 = arith.mulf %19, %24 : vector<2x128xf32>
    %26 = vector.broadcast %2 : vector<1x128xf32> to vector<2x128xf32>
    %27 = arith.mulf %25, %26 : vector<2x128xf32>
    %28 = vector.broadcast %3 : vector<1x128xf32> to vector<2x128xf32>
    %29 = arith.addf %27, %28 : vector<2x128xf32>
    %c0_21 = arith.constant 0 : index
    %c0_22 = arith.constant 0 : index
    %30 = vector.load %arg2[%c0_21, %c0_22] : memref<16x32xf32, #tpu.memory_space<vmem>>, vector<8x32xf32>
    %31 = vector.extract_strided_slice %29 {offsets = [0, 0], sizes = [1, 32], strides = [1, 1]} : vector<2x128xf32> to vector<1x32xf32>
    %32 = vector.extract_strided_slice %29 {offsets = [0, 32], sizes = [1, 32], strides = [1, 1]} : vector<2x128xf32> to vector<1x32xf32>
    %33 = vector.extract_strided_slice %29 {offsets = [0, 64], sizes = [1, 32], strides = [1, 1]} : vector<2x128xf32> to vector<1x32xf32>
    %34 = vector.extract_strided_slice %29 {offsets = [0, 96], sizes = [1, 32], strides = [1, 1]} : vector<2x128xf32> to vector<1x32xf32>
    %c8 = arith.constant 8 : index
    %c0_23 = arith.constant 0 : index
    %35 = vector.load %arg2[%c8, %c0_23] : memref<16x32xf32, #tpu.memory_space<vmem>>, vector<8x32xf32>
    %36 = vector.extract_strided_slice %29 {offsets = [1, 0], sizes = [1, 32], strides = [1, 1]} : vector<2x128xf32> to vector<1x32xf32>
    %37 = vector.extract_strided_slice %29 {offsets = [1, 32], sizes = [1, 32], strides = [1, 1]} : vector<2x128xf32> to vector<1x32xf32>
    %38 = vector.extract_strided_slice %29 {offsets = [1, 64], sizes = [1, 32], strides = [1, 1]} : vector<2x128xf32> to vector<1x32xf32>
    %39 = vector.extract_strided_slice %29 {offsets = [1, 96], sizes = [1, 32], strides = [1, 1]} : vector<2x128xf32> to vector<1x32xf32>
    %40 = tpu.concatenate %30, %31, %32, %33, %34, %35, %36, %37, %38, %39 in 0 : vector<8x32xf32>, vector<1x32xf32>, vector<1x32xf32>, vector<1x32xf32>, vector<1x32xf32>, vector<8x32xf32>, vector<1x32xf32>, vector<1x32xf32>, vector<1x32xf32>, vector<1x32xf32> -> vector<24x32xf32>
    %cst_24 = arith.constant dense<0.000000e+00> : vector<24x64xf32>
    %41 = tpu.matmul %40, %7, %cst_24 {dimension_numbers = #tpu.dot_dimension_numbers<[1], [0], [0], [1], [0, 0, 1, 1], [], []>} : vector<24x32xf32>, vector<32x64xf32>, vector<24x64xf32> -> vector<24x64xf32>
    %cst_25 = arith.constant dense<0.000000e+00> : vector<2x32xf32>
    %42 = tpu.matmul %14, %5, %cst_25 {dimension_numbers = #tpu.dot_dimension_numbers<[1], [0], [0], [1], [0, 0, 1, 1], [], []>} : vector<2x32xf32>, vector<32x32xf32>, vector<2x32xf32> -> vector<2x32xf32>
    %43 = vector.broadcast %4 : vector<1x32xf32> to vector<2x32xf32>
    %44 = arith.addf %42, %43 : vector<2x32xf32>
    %cst_26 = arith.constant dense<0.000000e+00> : vector<2x32xf32>
    %45 = tpu.matmul %44, %6, %cst_26 {dimension_numbers = #tpu.dot_dimension_numbers<[1], [0], [0], [1], [0, 0, 1, 1], [], []>} : vector<2x32xf32>, vector<32x32xf32>, vector<2x32xf32> -> vector<2x32xf32>
    %cst_27 = arith.constant dense<0.000000e+00> : vector<4x2xf32>
    %46 = tpu.matmul %10, %44, %cst_27 {dimension_numbers = #tpu.dot_dimension_numbers<[1], [1], [0], [0], [0, 0, 1, 0], [], []>} : vector<4x32xf32>, vector<2x32xf32>, vector<4x2xf32> -> vector<4x2xf32>
    %c0_28 = arith.constant 0 : index
    %c0_29 = arith.constant 0 : index
    %47 = vector.load %arg1[%c0_28, %c0_29] : memref<8x256xf32, #tpu.memory_space<vmem>>, vector<4x256xf32>
    %48 = vector.extract_strided_slice %41 {offsets = [0, 0], sizes = [12, 32], strides = [1, 1]} : vector<24x64xf32> to vector<12x32xf32>
    %49 = vector.extract_strided_slice %41 {offsets = [0, 32], sizes = [12, 32], strides = [1, 1]} : vector<24x64xf32> to vector<12x32xf32>
    %cst_30 = arith.constant dense<0.000000e+00> : vector<32x256xf32>
    %50 = tpu.matmul %8, %47, %cst_30 {dimension_numbers = #tpu.dot_dimension_numbers<[0], [0], [1], [1], [0, 1, 1, 1], [], []>} : vector<4x32xf32>, vector<4x256xf32>, vector<32x256xf32> -> vector<32x256xf32>
    %51 = vector.extract_strided_slice %45 {offsets = [0, 0], sizes = [1, 32], strides = [1, 1]} : vector<2x32xf32> to vector<1x32xf32>
    %cst_31 = arith.constant dense<0.000000e+00> : vector<12x1xf32>
    %52 = tpu.matmul %48, %51, %cst_31 {dimension_numbers = #tpu.dot_dimension_numbers<[1], [1], [0], [0], [0, 0, 1, 0], [], []>} : vector<12x32xf32>, vector<1x32xf32>, vector<12x1xf32> -> vector<12x1xf32>
    %cst_32 = arith.constant dense<0.000000e+00> : vector<12x256xf32>
    %53 = tpu.matmul %48, %50, %cst_32 {dimension_numbers = #tpu.dot_dimension_numbers<[1], [0], [0], [1], [0, 0, 1, 1], [], []>} : vector<12x32xf32>, vector<32x256xf32>, vector<12x256xf32> -> vector<12x256xf32>
    %54 = vector.broadcast %52 : vector<12x1xf32> to vector<12x256xf32>
    %55 = arith.addf %53, %54 : vector<12x256xf32>
    %cst_33 = arith.constant dense<0xFF800000> : vector<256xf32>
    %56 = vector.multi_reduction <maximumf>, %55, %cst_33 [0] : vector<12x256xf32> to vector<256xf32>
    %57 = vector.shape_cast %56 : vector<256xf32> to vector<1x256xf32>
    %58 = vector.broadcast %57 : vector<1x256xf32> to vector<12x256xf32>
    %59 = arith.subf %55, %58 : vector<12x256xf32>
    %60 = math.exp %59 : vector<12x256xf32>
    %cst_34 = arith.constant dense<0.000000e+00> : vector<256xf32>
    %61 = vector.multi_reduction <add>, %60, %cst_34 [0] : vector<12x256xf32> to vector<256xf32>
    %62 = vector.shape_cast %61 : vector<256xf32> to vector<1x256xf32>
    %63 = tpu.reciprocal %62 : vector<1x256xf32> -> vector<1x256xf32>
    %64 = vector.broadcast %63 : vector<1x256xf32> to vector<12x256xf32>
    %65 = arith.mulf %60, %64 : vector<12x256xf32>
    %cst_35 = arith.constant dense<0.000000e+00> : vector<4x12xf32>
    %66 = tpu.matmul %10, %49, %cst_35 {dimension_numbers = #tpu.dot_dimension_numbers<[1], [1], [0], [0], [0, 0, 1, 0], [], []>} : vector<4x32xf32>, vector<12x32xf32>, vector<4x12xf32> -> vector<4x12xf32>
    %cst_36 = arith.constant dense<0.000000e+00> : vector<4x256xf32>
    %67 = tpu.matmul %9, %47, %cst_36 {dimension_numbers = #tpu.dot_dimension_numbers<[1], [0], [0], [1], [0, 0, 1, 1], [], []>} : vector<4x4xf32>, vector<4x256xf32>, vector<4x256xf32> -> vector<4x256xf32>
    %cst_37 = arith.constant dense<0.000000e+00> : vector<4x256xf32>
    %68 = tpu.matmul %66, %65, %cst_37 {dimension_numbers = #tpu.dot_dimension_numbers<[1], [0], [0], [1], [0, 0, 1, 1], [], []>} : vector<4x12xf32>, vector<12x256xf32>, vector<4x256xf32> -> vector<4x256xf32>
    %69 = arith.addf %67, %68 : vector<4x256xf32>
    %70 = vector.extract_strided_slice %46 {offsets = [0, 0], sizes = [4, 1], strides = [1, 1]} : vector<4x2xf32> to vector<4x1xf32>
    %71 = vector.broadcast %70 : vector<4x1xf32> to vector<4x256xf32>
    %72 = arith.addf %69, %71 : vector<4x256xf32>
    %73 = vector.broadcast %11 : vector<4x1xf32> to vector<4x256xf32>
    %74 = arith.addf %72, %73 : vector<4x256xf32>
    %c4 = arith.constant 4 : index
    %c0_38 = arith.constant 0 : index
    %75 = vector.load %arg1[%c4, %c0_38] : memref<8x256xf32, #tpu.memory_space<vmem>>, vector<4x256xf32>
    %76 = vector.extract_strided_slice %41 {offsets = [12, 0], sizes = [12, 32], strides = [1, 1]} : vector<24x64xf32> to vector<12x32xf32>
    %77 = vector.extract_strided_slice %41 {offsets = [12, 32], sizes = [12, 32], strides = [1, 1]} : vector<24x64xf32> to vector<12x32xf32>
    %cst_39 = arith.constant dense<0.000000e+00> : vector<32x256xf32>
    %78 = tpu.matmul %8, %75, %cst_39 {dimension_numbers = #tpu.dot_dimension_numbers<[0], [0], [1], [1], [0, 1, 1, 1], [], []>} : vector<4x32xf32>, vector<4x256xf32>, vector<32x256xf32> -> vector<32x256xf32>
    %79 = vector.extract_strided_slice %45 {offsets = [1, 0], sizes = [1, 32], strides = [1, 1]} : vector<2x32xf32> to vector<1x32xf32>
    %cst_40 = arith.constant dense<0.000000e+00> : vector<12x1xf32>
    %80 = tpu.matmul %76, %79, %cst_40 {dimension_numbers = #tpu.dot_dimension_numbers<[1], [1], [0], [0], [0, 0, 1, 0], [], []>} : vector<12x32xf32>, vector<1x32xf32>, vector<12x1xf32> -> vector<12x1xf32>
    %cst_41 = arith.constant dense<0.000000e+00> : vector<12x256xf32>
    %81 = tpu.matmul %76, %78, %cst_41 {dimension_numbers = #tpu.dot_dimension_numbers<[1], [0], [0], [1], [0, 0, 1, 1], [], []>} : vector<12x32xf32>, vector<32x256xf32>, vector<12x256xf32> -> vector<12x256xf32>
    %82 = vector.broadcast %80 : vector<12x1xf32> to vector<12x256xf32>
    %83 = arith.addf %81, %82 : vector<12x256xf32>
    %cst_42 = arith.constant dense<0xFF800000> : vector<256xf32>
    %84 = vector.multi_reduction <maximumf>, %83, %cst_42 [0] : vector<12x256xf32> to vector<256xf32>
    %85 = vector.shape_cast %84 : vector<256xf32> to vector<1x256xf32>
    %86 = vector.broadcast %85 : vector<1x256xf32> to vector<12x256xf32>
    %87 = arith.subf %83, %86 : vector<12x256xf32>
    %88 = math.exp %87 : vector<12x256xf32>
    %cst_43 = arith.constant dense<0.000000e+00> : vector<256xf32>
    %89 = vector.multi_reduction <add>, %88, %cst_43 [0] : vector<12x256xf32> to vector<256xf32>
    %90 = vector.shape_cast %89 : vector<256xf32> to vector<1x256xf32>
    %91 = tpu.reciprocal %90 : vector<1x256xf32> -> vector<1x256xf32>
    %92 = vector.broadcast %91 : vector<1x256xf32> to vector<12x256xf32>
    %93 = arith.mulf %88, %92 : vector<12x256xf32>
    %cst_44 = arith.constant dense<0.000000e+00> : vector<4x12xf32>
    %94 = tpu.matmul %10, %77, %cst_44 {dimension_numbers = #tpu.dot_dimension_numbers<[1], [1], [0], [0], [0, 0, 1, 0], [], []>} : vector<4x32xf32>, vector<12x32xf32>, vector<4x12xf32> -> vector<4x12xf32>
    %cst_45 = arith.constant dense<0.000000e+00> : vector<4x256xf32>
    %95 = tpu.matmul %9, %75, %cst_45 {dimension_numbers = #tpu.dot_dimension_numbers<[1], [0], [0], [1], [0, 0, 1, 1], [], []>} : vector<4x4xf32>, vector<4x256xf32>, vector<4x256xf32> -> vector<4x256xf32>
    %cst_46 = arith.constant dense<0.000000e+00> : vector<4x256xf32>
    %96 = tpu.matmul %94, %93, %cst_46 {dimension_numbers = #tpu.dot_dimension_numbers<[1], [0], [0], [1], [0, 0, 1, 1], [], []>} : vector<4x12xf32>, vector<12x256xf32>, vector<4x256xf32> -> vector<4x256xf32>
    %97 = arith.addf %95, %96 : vector<4x256xf32>
    %98 = vector.extract_strided_slice %46 {offsets = [0, 1], sizes = [4, 1], strides = [1, 1]} : vector<4x2xf32> to vector<4x1xf32>
    %99 = vector.broadcast %98 : vector<4x1xf32> to vector<4x256xf32>
    %100 = arith.addf %97, %99 : vector<4x256xf32>
    %101 = vector.broadcast %11 : vector<4x1xf32> to vector<4x256xf32>
    %102 = arith.addf %100, %101 : vector<4x256xf32>
    %103 = tpu.concatenate %74, %102 in 0 : vector<4x256xf32>, vector<4x256xf32> -> vector<8x256xf32>
    %c0_47 = arith.constant 0 : index
    %c0_48 = arith.constant 0 : index
    %104 = vector.load %arg4[%c0_47, %c0_48] : memref<8x256xf32, #tpu.memory_space<vmem>>, vector<8x256xf32>
    tpu.vector_store %arg4[%c0_47, %c0_48], %103 {strides = array<i32>} : memref<8x256xf32, #tpu.memory_space<vmem>>, vector<8x256xf32>,
    return
  }
}

</mosaic_0001>

<llo_original>
// kernel: ip_adapter_forward.1
$region0: #{ip_adapter_forward.1}
  #allocation0 [shape = 'u32[]', space=smem, size = 0x4, offset = 0x4, fixed_abs, tag = 'smem constant byte address 0x4 - core index']
  #allocation1 [shape = 'u32[144,128]{1,0:T(1,128)}', space=vmem, size = 0x12000, scoped, tag = 'internal scratch']
  %s0 = inlined_call_operand.hbm [shape: f32[304,128], index: 0, kind: input, shape index: {}]
  %s1 = inlined_call_operand.vmem [shape: f32[8,256], index: 1, kind: input, shape index: {}]
  %s2 = inlined_call_operand.vmem [shape: f32[16,32], index: 2, kind: input, shape index: {}]
  %s3 = inlined_call_operand.vmem [shape: f32[2,96], index: 3, kind: input, shape index: {}]
  %s4 = inlined_call_operand.vmem [shape: f32[8,256], index: 4, kind: output, shape index: {}]
  %s5 = sld [smem:[#allocation0]]
  $region30: #{ip_adapter_forward.1} parent=0
    _
  %s7 = ssub.s32 1, %s5
  %s8 = scalar_select 0, %s7, %s5
  $region1: #{ip_adapter_forward.1} parent=0
    #allocation2 [shape = 'u8[155648]{0}', space=vmem, size = 0x26000, scoped, tag = 'input window, operand 0, single buffered']
    #allocation3 [shape = 's32[1]{0}', space=sflag, size = 0x4, scoped, tag = 'scoped memory for ip_adapter_forward.1']
    %9 = vsyncpa [#allocation3], 0
    // Predicated region
    $region2: #{ip_adapter_forward.1} parent=1 // pred_check
      _
    $region3: #{ip_adapter_forward.1} parent=1 // pred_check_branch
      %11 = sbr.rel (0) target = $region5
    $region4: #{ip_adapter_forward.1} parent=1 // pred_region
      %s13 = ssub.s32 4864, 4864
      %14 = vsyncadd [#allocation3], %s13
      %s15 = sshll.u32 [#allocation2], 4
      %s16 = int_to_ptr.vmem [resolvable:$true] %s15
      %21 = dma.hbm_to_vmem [thread:$0]  %s0, 4864, %s16, [#allocation3], 128, 128, 8
    $region5: #{ip_adapter_forward.1} parent=1 // pred_fallthru
      _
    // Predicated region
    $region6: #{ip_adapter_forward.1} parent=1 // pred_check
      _
    $region7: #{ip_adapter_forward.1} parent=1 // pred_check_branch
      %23 = sbr.rel (0) target = $region9
    $region8: #{ip_adapter_forward.1} parent=1 // pred_region
      _
    $region9: #{ip_adapter_forward.1} parent=1 // pred_fallthru
      _
    // Predicated region
    $region10: #{ip_adapter_forward.1} parent=1 // pred_check
      _
    $region11: #{ip_adapter_forward.1} parent=1 // pred_check_branch
      %25 = sbr.rel (0) target = $region13
    $region12: #{ip_adapter_forward.1} parent=1 // pred_region
      _
    $region13: #{ip_adapter_forward.1} parent=1 // pred_fallthru
      _
    // Predicated region
    $region14: #{ip_adapter_forward.1} parent=1 // pred_check
      _
    $region15: #{ip_adapter_forward.1} parent=1 // pred_check_branch
      %27 = sbr.rel (0) target = $region17
    $region16: #{ip_adapter_forward.1} parent=1 // pred_region
      _
    $region17: #{ip_adapter_forward.1} parent=1 // pred_fallthru
      _
    // Predicated region
    $region18: #{ip_adapter_forward.1} parent=1 // pred_check
      _
    $region19: #{ip_adapter_forward.1} parent=1 // pred_check_branch
      %29 = sbr.rel (0) target = $region21
    $region20: #{ip_adapter_forward.1} parent=1 // pred_region
      %30 = dma.done [#allocation3], 4864
    $region21: #{ip_adapter_forward.1} parent=1 // pred_fallthru
      _
    %v31 = vld [vmem:[#allocation2] sm:$0xff]
    %v32 = vld [vmem:[#allocation2 + $0x8] sm:$0xff]
    %v33 = vld [vmem:[#allocation2 + $0x10] sm:$0xff]
    %v34 = vld [vmem:[#allocation2 + $0x18] sm:$0xff]
    %v35 = vld [vmem:[#allocation2 + $0x20] sm:$0xff]
    %v36 = vld [vmem:[#allocation2 + $0x28] sm:$0xff]
    %v37 = vld [vmem:[#allocation2 + $0x30] sm:$0xff]
    %v38 = vld [vmem:[#allocation2 + $0x38] sm:$0xff]
    %v39 = vld [vmem:[#allocation2 + $0x40] sm:$0x1]
    %v40 = vld [vmem:[#allocation2 + $0x41] sm:$0x1]
    %v41 = vld [vmem:[#allocation2 + $0x42] sm:$0x1]
    %v42 = vld [vmem:[#allocation2 + $0x43] sm:$0x1]
    %v43 = vld [vmem:[#allocation2 + $0x48] sm:$0xff]
    %v44 = vld [vmem:[#allocation2 + $0x50] sm:$0xff]
    %v45 = vld [vmem:[#allocation2 + $0x58] sm:$0xff]
    %v46 = vld [vmem:[#allocation2 + $0x60] sm:$0xff]
    %v47 = vld [vmem:[#allocation2 + $0x68] sm:$0xff]
    %v48 = vld [vmem:[#allocation2 + $0x70] sm:$0xff]
    %v49 = vld [vmem:[#allocation2 + $0x78] sm:$0xff]
    %v50 = vld [vmem:[#allocation2 + $0x80] sm:$0xff]
    %v51 = vld [vmem:[#allocation2 + $0x88] sm:$0xff]
    %v52 = vld [vmem:[#allocation2 + $0x90] sm:$0xff]
    %v53 = vld [vmem:[#allocation2 + $0x98] sm:$0xff]
    %v54 = vld [vmem:[#allocation2 + $0xa0] sm:$0xff]
    %v55 = vld [vmem:[#allocation2 + $0xa8] sm:$0xf]
    %v56 = vld [vmem:[#allocation2 + $0xac] sm:$0xf]
    %v57 = vld [vmem:[#allocation2 + $0xb0] sm:$0xff]
    %v58 = vld [vmem:[#allocation2 + $0xb8] sm:$0xff]
    %v59 = vld [vmem:[#allocation2 + $0xc0] sm:$0xff]
    %v60 = vld [vmem:[#allocation2 + $0xc8] sm:$0xff]
    %v61 = vld [vmem:[#allocation2 + $0xd0] sm:$0xff]
    %v62 = vld [vmem:[#allocation2 + $0xd8] sm:$0xff]
    %v63 = vld [vmem:[#allocation2 + $0xe0] sm:$0xff]
    %v64 = vld [vmem:[#allocation2 + $0xe8] sm:$0xff]
    %v65 = vld [vmem:[#allocation2 + $0xf0] sm:$0xff]
    %v66 = vld [vmem:[#allocation2 + $0xf8] sm:$0xff]
    %v67 = vld [vmem:[#allocation2 + $0x100] sm:$0xff]
    %v68 = vld [vmem:[#allocation2 + $0x108] sm:$0xff]
    %v69 = vld [vmem:[#allocation2 + $0x110] sm:$0xff]
    %v70 = vld [vmem:[#allocation2 + $0x118] sm:$0xff]
    %v71 = vld [vmem:[#allocation2 + $0x120] sm:$0xff]
    %v72 = vld [vmem:[#allocation2 + $0x128] sm:$0xff]
    %v73 = vld [vmem:[%s3] sm:$0x3]
    %v74 = vlaneseq
    %v75 = vshrl.u32 %v74, 7
    %v76 = vsub.s32 0, %v75
    %v77 = vrot.slane %v39, %v76
    %vm78 = vcmask 523264
    %v80 = vsel %vm78, %v73, 0
    %82 = vmatprep.subr.mxu0 0.0
    %83 = vmatpush1.msra.mxu0 0.0
    %84 = vmatprep.subr.mxu0 0.0
    %85 = vmatpush1.msra.mxu0 0.0
    %86 = vmatprep.subr.mxu0 0.0
    %87 = vmatpush1.msra.mxu0 0.0
    %88 = vmatprep.subr.mxu0 0.0
    %89 = vmatpush1.msra.mxu0 0.0
    %90 = vmatprep.subr.mxu0 0.0
    %91 = vmatpush1.msra.mxu0 0.0
    %92 = vmatprep.subr.mxu0 0.0
    %93 = vmatpush1.msra.mxu0 0.0
    %94 = vmatprep.subr.mxu0 0.0
    %95 = vmatpush1.msra.mxu0 0.0
    %96 = vmatprep.subr.mxu0 0.0
    %97 = vmatpush1.msra.mxu0 0.0
    %98 = vmatprep.subr.mxu0 0.0
    %99 = vmatpush1.msra.mxu0 %v38
    %100 = vmatprep.subr.mxu0 0.0
    %101 = vmatpush1.msra.mxu0 %v37
    %102 = vmatprep.subr.mxu0 0.0
    %103 = vmatpush1.msra.mxu0 %v36
    %104 = vmatprep.subr.mxu0 0.0
    %105 = vmatpush1.msra.mxu0 %v35
    %106 = vmatprep.subr.mxu0 0.0
    %107 = vmatpush1.msra.mxu0 %v34
    %108 = vmatprep.subr.mxu0 0.0
    %109 = vmatpush1.msra.mxu0 %v33
    %110 = vmatprep.subr.mxu0 0.0
    %111 = vmatpush1.msra.mxu0 %v32
    %112 = vmatprep.subr.mxu0 0.0
    %113 = vmatpush1.msra.mxu0 %v31
    %114 = vmatprep.subr.mxu0 0.0
    %115 = vmatpush2.msra.mxu0 0.0
    %116 = vmatprep.subr.mxu0 0.0
    %117 = vmatpush2.msra.mxu0 0.0
    %118 = vmatprep.subr.mxu0 0.0
    %119 = vmatpush2.msra.mxu0 0.0
    %120 = vmatprep.subr.mxu0 0.0
    %121 = vmatpush2.msra.mxu0 0.0
    %122 = vmatprep.subr.mxu0 0.0
    %123 = vmatpush2.msra.mxu0 0.0
    %124 = vmatprep.subr.mxu0 0.0
    %125 = vmatpush2.msra.mxu0 0.0
    %126 = vmatprep.subr.mxu0 0.0
    %127 = vmatpush2.msra.mxu0 0.0
    %128 = vmatprep.subr.mxu0 0.0
    %129 = vmatpush2.msra.mxu0 0.0
    %130 = vmatprep.subr.mxu0 0.0
    %131 = vmatpush2.msra.mxu0 0.0
    %132 = vmatprep.subr.mxu0 0.0
    %133 = vmatpush2.msra.mxu0 0.0
    %134 = vmatprep.subr.mxu0 0.0
    %135 = vmatpush2.msra.mxu0 0.0
    %136 = vmatprep.subr.mxu0 0.0
    %137 = vmatpush2.msra.mxu0 0.0
    %138 = vmatprep.subr.mxu0 0.0
    %139 = vmatpush2.msra.mxu0 0.0
    %140 = vmatprep.subr.mxu0 0.0
    %141 = vmatpush2.msra.mxu0 0.0
    %142 = vmatprep.subr.mxu0 0.0
    %143 = vmatpush2.msra.mxu0 0.0
    %144 = vmatprep.subr.mxu0 0.0
    %145 = vmatpush2.msra.mxu0 0.0
    %146 = vmatprep.mubr.f32.mxu0 0.0
    %147 = vmatmul.mubr.f32.gmra.mxu0 %v80
    %v148 = vpop.f32.mrf.mxu0
    %v149 = vadd.f32 %v77, %v148
    %v150 = vpop.f32.mrf.mxu0
    %151 = vdwg.mxu0
    %152 = vmatprep.subr.mxu0 0.0
    %153 = vmatpush1.msra.mxu0 %v72
    %154 = vmatprep.subr.mxu0 0.0
    %155 = vmatpush1.msra.mxu0 %v71
    %156 = vmatprep.subr.mxu0 0.0
    %157 = vmatpush1.msra.mxu0 %v70
    %158 = vmatprep.subr.mxu0 0.0
    %159 = vmatpush1.msra.mxu0 %v69
    %160 = vmatprep.subr.mxu0 0.0
    %161 = vmatpush1.msra.mxu0 %v68
    %162 = vmatprep.subr.mxu0 0.0
    %163 = vmatpush1.msra.mxu0 %v67
    %164 = vmatprep.subr.mxu0 0.0
    %165 = vmatpush1.msra.mxu0 %v66
    %166 = vmatprep.subr.mxu0 0.0
    %167 = vmatpush1.msra.mxu0 %v65
    %168 = vmatprep.subr.mxu0 0.0
    %169 = vmatpush1.msra.mxu0 %v64
    %170 = vmatprep.subr.mxu0 0.0
    %171 = vmatpush1.msra.mxu0 %v63
    %172 = vmatprep.subr.mxu0 0.0
    %173 = vmatpush1.msra.mxu0 %v62
    %174 = vmatprep.subr.mxu0 0.0
    %175 = vmatpush1.msra.mxu0 %v61
    %176 = vmatprep.subr.mxu0 0.0
    %177 = vmatpush1.msra.mxu0 %v60
    %178 = vmatprep.subr.mxu0 0.0
    %179 = vmatpush1.msra.mxu0 %v59
    %180 = vmatprep.subr.mxu0 0.0
    %181 = vmatpush1.msra.mxu0 %v58
    %182 = vmatprep.subr.mxu0 0.0
    %183 = vmatpush1.msra.mxu0 %v57
    %184 = vmatprep.subr.mxu0 0.0
    %185 = vmatpush2.msra.mxu0 0.0
    %186 = vmatprep.subr.mxu0 0.0
    %187 = vmatpush2.msra.mxu0 0.0
    %188 = vmatprep.subr.mxu0 0.0
    %189 = vmatpush2.msra.mxu0 0.0
    %190 = vmatprep.subr.mxu0 0.0
    %191 = vmatpush2.msra.mxu0 0.0
    %192 = vmatprep.subr.mxu0 0.0
    %193 = vmatpush2.msra.mxu0 0.0
    %194 = vmatprep.subr.mxu0 0.0
    %195 = vmatpush2.msra.mxu0 0.0
    %196 = vmatprep.subr.mxu0 0.0
    %197 = vmatpush2.msra.mxu0 0.0
    %198 = vmatprep.subr.mxu0 0.0
    %199 = vmatpush2.msra.mxu0 0.0
    %200 = vmatprep.subr.mxu0 0.0
    %201 = vmatpush2.msra.mxu0 0.0
    %202 = vmatprep.subr.mxu0 0.0
    %203 = vmatpush2.msra.mxu0 0.0
    %204 = vmatprep.subr.mxu0 0.0
    %205 = vmatpush2.msra.mxu0 0.0
    %206 = vmatprep.subr.mxu0 0.0
    %207 = vmatpush2.msra.mxu0 0.0
    %208 = vmatprep.subr.mxu0 0.0
    %209 = vmatpush2.msra.mxu0 0.0
    %210 = vmatprep.subr.mxu0 0.0
    %211 = vmatpush2.msra.mxu0 0.0
    %212 = vmatprep.subr.mxu0 0.0
    %213 = vmatpush2.msra.mxu0 0.0
    %214 = vmatprep.subr.mxu0 0.0
    %215 = vmatpush2.msra.mxu0 0.0
    %216 = vmatprep.mubr.f32.mxu0 0.0
    %217 = vmatmul.mubr.f32.gmra.mxu0 %v149
    %v218 = vpop.f32.mrf.mxu0
    %v219 = vadd.f32 0.0, %v218
    %v220 = vpop.f32.mrf.mxu0
    %221 = vdwg.mxu0
    %v222 = vsub.f32 %v149, %v219
    %v223 = vmul.f32 %v222, %v222
    %224 = vmatprep.subr.mxu0 0.0
    %225 = vmatpush1.msra.mxu0 %v72
    %226 = vmatprep.subr.mxu0 0.0
    %227 = vmatpush1.msra.mxu0 %v71
    %228 = vmatprep.subr.mxu0 0.0
    %229 = vmatpush1.msra.mxu0 %v70
    %230 = vmatprep.subr.mxu0 0.0
    %231 = vmatpush1.msra.mxu0 %v69
    %232 = vmatprep.subr.mxu0 0.0
    %233 = vmatpush1.msra.mxu0 %v68
    %234 = vmatprep.subr.mxu0 0.0
    %235 = vmatpush1.msra.mxu0 %v67
    %236 = vmatprep.subr.mxu0 0.0
    %237 = vmatpush1.msra.mxu0 %v66
    %238 = vmatprep.subr.mxu0 0.0
    %239 = vmatpush1.msra.mxu0 %v65
    %240 = vmatprep.subr.mxu0 0.0
    %241 = vmatpush1.msra.mxu0 %v64
    %242 = vmatprep.subr.mxu0 0.0
    %243 = vmatpush1.msra.mxu0 %v63
    %244 = vmatprep.subr.mxu0 0.0
    %245 = vmatpush1.msra.mxu0 %v62
    %246 = vmatprep.subr.mxu0 0.0
    %247 = vmatpush1.msra.mxu0 %v61
    %248 = vmatprep.subr.mxu0 0.0
    %249 = vmatpush1.msra.mxu0 %v60
    %250 = vmatprep.subr.mxu0 0.0
    %251 = vmatpush1.msra.mxu0 %v59
    %252 = vmatprep.subr.mxu0 0.0
    %253 = vmatpush1.msra.mxu0 %v58
    %254 = vmatprep.subr.mxu0 0.0
    %255 = vmatpush1.msra.mxu0 %v57
    %256 = vmatprep.subr.mxu0 0.0
    %257 = vmatpush2.msra.mxu0 0.0
    %258 = vmatprep.subr.mxu0 0.0
    %259 = vmatpush2.msra.mxu0 0.0
    %260 = vmatprep.subr.mxu0 0.0
    %261 = vmatpush2.msra.mxu0 0.0
    %262 = vmatprep.subr.mxu0 0.0
    %263 = vmatpush2.msra.mxu0 0.0
    %264 = vmatprep.subr.mxu0 0.0
    %265 = vmatpush2.msra.mxu0 0.0
    %266 = vmatprep.subr.mxu0 0.0
    %267 = vmatpush2.msra.mxu0 0.0
    %268 = vmatprep.subr.mxu0 0.0
    %269 = vmatpush2.msra.mxu0 0.0
    %270 = vmatprep.subr.mxu0 0.0
    %271 = vmatpush2.msra.mxu0 0.0
    %272 = vmatprep.subr.mxu0 0.0
    %273 = vmatpush2.msra.mxu0 0.0
    %274 = vmatprep.subr.mxu0 0.0
    %275 = vmatpush2.msra.mxu0 0.0
    %276 = vmatprep.subr.mxu0 0.0
    %277 = vmatpush2.msra.mxu0 0.0
    %278 = vmatprep.subr.mxu0 0.0
    %279 = vmatpush2.msra.mxu0 0.0
    %280 = vmatprep.subr.mxu0 0.0
    %281 = vmatpush2.msra.mxu0 0.0
    %282 = vmatprep.subr.mxu0 0.0
    %283 = vmatpush2.msra.mxu0 0.0
    %284 = vmatprep.subr.mxu0 0.0
    %285 = vmatpush2.msra.mxu0 0.0
    %286 = vmatprep.subr.mxu0 0.0
    %287 = vmatpush2.msra.mxu0 0.0
    %288 = vmatprep.mubr.f32.mxu0 0.0
    %289 = vmatmul.mubr.f32.gmra.mxu0 %v223
    %v290 = vpop.f32.mrf.mxu0
    %v291 = vadd.f32 1e-05, %v290
    %v292 = vpop.f32.mrf.mxu0
    %293 = vdwg.mxu0
    %v294 = vrsqrt.pop %v291
    %v295 = vmul.f32 %v222, %v294
    %v296 = vlaneseq
    %v297 = vshrl.u32 %v296, 7
    %v298 = vsub.s32 0, %v297
    %v299 = vrot.slane %v40, %v298
    %v300 = vmul.f32 %v295, %v299
    %v301 = vlaneseq
    %v302 = vshrl.u32 %v301, 7
    %v303 = vsub.s32 0, %v302
    %v304 = vrot.slane %v41, %v303
    %v305 = vadd.f32 %v300, %v304
    %v306 = vld [vmem:[%s2] sm:$0xff]
    %v307 = vld [vmem:[%s2 + $0x8] sm:$0xff]
    %v309 = vrot.slane %v305, 7
    %310 = vrot.lane.b32.xlu0 %v309, 96
    %v311 = vpop.permute.xlu0 %310
    %v313 = vrot.slane %v305, 6
    %314 = vrot.lane.b32.xlu0 %v313, 64
    %v315 = vpop.permute.xlu0 %314
    %v317 = vrot.slane %v305, 5
    %318 = vrot.lane.b32.xlu0 %v317, 32
    %v319 = vpop.permute.xlu0 %318
    %v322 = vrot.slane %v307, 4
    %v325 = vrot.slane %v305, 4
    %326 = vrot.lane.b32.xlu0 %v325, 96
    %v327 = vpop.permute.xlu0 %326
    %v329 = vrot.slane %v305, 3
    %330 = vrot.lane.b32.xlu0 %v329, 64
    %v331 = vpop.permute.xlu0 %330
    %v333 = vrot.slane %v305, 2
    %334 = vrot.lane.b32.xlu0 %v333, 32
    %v335 = vpop.permute.xlu0 %334
    %vm337 = vcmask 1040384
    %v338 = vsel %vm337, %v305, %v311
    %vm339 = vcmask 1041408
    %v340 = vsel %vm339, %v338, %v315
    %vm341 = vcmask 1042432
    %v342 = vsel %vm341, %v340, %v319
    %vm343 = vcmask 1043456
    %v344 = vsel %vm343, %v342, %v322
    %v345 = vsel %vm343, %v322, %v317
    %vm346 = vcmask 1044480
    %v347 = vsel %vm346, %v345, %v327
    %vm348 = vcmask 1045504
    %v349 = vsel %vm348, %v347, %v331
    %vm350 = vcmask 1046528
    %v351 = vsel %vm350, %v349, %v335
    %vm352 = vcmask 261120
    %v354 = vsel %vm352, %v306, 0
    %v357 = vsel %vm352, %v344, 0
    %v360 = vsel %vm352, %v351, 0
    %362 = vmatprep.subr.mxu0 0.0
    %363 = vmatpush1.msra.mxu0 0.0
    %364 = vmatprep.subr.mxu0 0.0
    %365 = vmatpush1.msra.mxu0 0.0
    %366 = vmatprep.subr.mxu0 0.0
    %367 = vmatpush1.msra.mxu0 0.0
    %368 = vmatprep.subr.mxu0 0.0
    %369 = vmatpush1.msra.mxu0 0.0
    %370 = vmatprep.subr.mxu0 0.0
    %371 = vmatpush1.msra.mxu0 0.0
    %372 = vmatprep.subr.mxu0 0.0
    %373 = vmatpush1.msra.mxu0 0.0
    %374 = vmatprep.subr.mxu0 0.0
    %375 = vmatpush1.msra.mxu0 0.0
    %376 = vmatprep.subr.mxu0 0.0
    %377 = vmatpush1.msra.mxu0 0.0
    %378 = vmatprep.subr.mxu0 0.0
    %379 = vmatpush1.msra.mxu0 0.0
    %380 = vmatprep.subr.mxu0 0.0
    %381 = vmatpush1.msra.mxu0 0.0
    %382 = vmatprep.subr.mxu0 0.0
    %383 = vmatpush1.msra.mxu0 0.0
    %384 = vmatprep.subr.mxu0 0.0
    %385 = vmatpush1.msra.mxu0 0.0
    %386 = vmatprep.subr.mxu0 0.0
    %387 = vmatpush1.msra.mxu0 %v54
    %388 = vmatprep.subr.mxu0 0.0
    %389 = vmatpush1.msra.mxu0 %v53
    %390 = vmatprep.subr.mxu0 0.0
    %391 = vmatpush1.msra.mxu0 %v52
    %392 = vmatprep.subr.mxu0 0.0
    %393 = vmatpush1.msra.mxu0 %v51
    %394 = vmatprep.subr.mxu0 0.0
    %395 = vmatpush2.msra.mxu0 0.0
    %396 = vmatprep.subr.mxu0 0.0
    %397 = vmatpush2.msra.mxu0 0.0
    %398 = vmatprep.subr.mxu0 0.0
    %399 = vmatpush2.msra.mxu0 0.0
    %400 = vmatprep.subr.mxu0 0.0
    %401 = vmatpush2.msra.mxu0 0.0
    %402 = vmatprep.subr.mxu0 0.0
    %403 = vmatpush2.msra.mxu0 0.0
    %404 = vmatprep.subr.mxu0 0.0
    %405 = vmatpush2.msra.mxu0 0.0
    %406 = vmatprep.subr.mxu0 0.0
    %407 = vmatpush2.msra.mxu0 0.0
    %408 = vmatprep.subr.mxu0 0.0
    %409 = vmatpush2.msra.mxu0 0.0
    %410 = vmatprep.subr.mxu0 0.0
    %411 = vmatpush2.msra.mxu0 0.0
    %412 = vmatprep.subr.mxu0 0.0
    %413 = vmatpush2.msra.mxu0 0.0
    %414 = vmatprep.subr.mxu0 0.0
    %415 = vmatpush2.msra.mxu0 0.0
    %416 = vmatprep.subr.mxu0 0.0
    %417 = vmatpush2.msra.mxu0 0.0
    %418 = vmatprep.subr.mxu0 0.0
    %419 = vmatpush2.msra.mxu0 0.0
    %420 = vmatprep.subr.mxu0 0.0
    %421 = vmatpush2.msra.mxu0 0.0
    %422 = vmatprep.subr.mxu0 0.0
    %423 = vmatpush2.msra.mxu0 0.0
    %424 = vmatprep.subr.mxu0 0.0
    %425 = vmatpush2.msra.mxu0 0.0
    %426 = vmatprep.mubr.f32.mxu0 0.0
    %427 = vmatmul.mubr.f32.gmra.mxu0 %v354
    %v428 = vpop.f32.mrf.mxu0
    %v429 = vadd.f32 0.0, %v428
    %v430 = vpop.f32.mrf.mxu0
    %431 = vmatprep.mubr.f32.mxu0 0.0
    %432 = vmatmul.mubr.f32.gmra.mxu0 %v357
    %v433 = vpop.f32.mrf.mxu0
    %v434 = vadd.f32 0.0, %v433
    %v435 = vpop.f32.mrf.mxu0
    %436 = vmatprep.mubr.f32.mxu0 0.0
    %437 = vmatmul.mubr.f32.gmra.mxu0 %v360
    %v438 = vpop.f32.mrf.mxu0
    %v439 = vadd.f32 0.0, %v438
    %v440 = vpop.f32.mrf.mxu0
    %441 = vdwg.mxu0
    %v442 = vlaneseq
    %v443 = vshrl.u32 %v442, 7
    %v444 = vsub.s32 0, %v443
    %v445 = vrot.slane %v42, %v444
    %446 = vrot.lane.b32.xlu0 %v73, 64
    %v447 = vpop.permute.xlu0 %446
    %v448 = vsel %vm352, %v447, 0
    %450 = vmatprep.subr.mxu0 0.0
    %451 = vmatpush1.msra.mxu0 0.0
    %452 = vmatprep.subr.mxu0 0.0
    %453 = vmatpush1.msra.mxu0 0.0
    %454 = vmatprep.subr.mxu0 0.0
    %455 = vmatpush1.msra.mxu0 0.0
    %456 = vmatprep.subr.mxu0 0.0
    %457 = vmatpush1.msra.mxu0 0.0
    %458 = vmatprep.subr.mxu0 0.0
    %459 = vmatpush1.msra.mxu0 0.0
    %460 = vmatprep.subr.mxu0 0.0
    %461 = vmatpush1.msra.mxu0 0.0
    %462 = vmatprep.subr.mxu0 0.0
    %463 = vmatpush1.msra.mxu0 0.0
    %464 = vmatprep.subr.mxu0 0.0
    %465 = vmatpush1.msra.mxu0 0.0
    %466 = vmatprep.subr.mxu0 0.0
    %467 = vmatpush1.msra.mxu0 0.0
    %468 = vmatprep.subr.mxu0 0.0
    %469 = vmatpush1.msra.mxu0 0.0
    %470 = vmatprep.subr.mxu0 0.0
    %471 = vmatpush1.msra.mxu0 0.0
    %472 = vmatprep.subr.mxu0 0.0
    %473 = vmatpush1.msra.mxu0 0.0
    %474 = vmatprep.subr.mxu0 0.0
    %475 = vmatpush1.msra.mxu0 %v46
    %476 = vmatprep.subr.mxu0 0.0
    %477 = vmatpush1.msra.mxu0 %v45
    %478 = vmatprep.subr.mxu0 0.0
    %479 = vmatpush1.msra.mxu0 %v44
    %480 = vmatprep.subr.mxu0 0.0
    %481 = vmatpush1.msra.mxu0 %v43
    %482 = vmatprep.subr.mxu0 0.0
    %483 = vmatpush2.msra.mxu0 0.0
    %484 = vmatprep.subr.mxu0 0.0
    %485 = vmatpush2.msra.mxu0 0.0
    %486 = vmatprep.subr.mxu0 0.0
    %487 = vmatpush2.msra.mxu0 0.0
    %488 = vmatprep.subr.mxu0 0.0
    %489 = vmatpush2.msra.mxu0 0.0
    %490 = vmatprep.subr.mxu0 0.0
    %491 = vmatpush2.msra.mxu0 0.0
    %492 = vmatprep.subr.mxu0 0.0
    %493 = vmatpush2.msra.mxu0 0.0
    %494 = vmatprep.subr.mxu0 0.0
    %495 = vmatpush2.msra.mxu0 0.0
    %496 = vmatprep.subr.mxu0 0.0
    %497 = vmatpush2.msra.mxu0 0.0
    %498 = vmatprep.subr.mxu0 0.0
    %499 = vmatpush2.msra.mxu0 0.0
    %500 = vmatprep.subr.mxu0 0.0
    %501 = vmatpush2.msra.mxu0 0.0
    %502 = vmatprep.subr.mxu0 0.0
    %503 = vmatpush2.msra.mxu0 0.0
    %504 = vmatprep.subr.mxu0 0.0
    %505 = vmatpush2.msra.mxu0 0.0
    %506 = vmatprep.subr.mxu0 0.0
    %507 = vmatpush2.msra.mxu0 0.0
    %508 = vmatprep.subr.mxu0 0.0
    %509 = vmatpush2.msra.mxu0 0.0
    %510 = vmatprep.subr.mxu0 0.0
    %511 = vmatpush2.msra.mxu0 0.0
    %512 = vmatprep.subr.mxu0 0.0
    %513 = vmatpush2.msra.mxu0 0.0
    %514 = vmatprep.mubr.f32.mxu0 0.0
    %515 = vmatmul.mubr.f32.gmra.mxu0 %v448
    %v516 = vpop.f32.mrf.mxu0
    %v517 = vadd.f32 %v445, %v516
    %v518 = vpop.f32.mrf.mxu0
    %519 = vdwg.mxu0
    %v521 = vsel %vm352, %v517, 0
    %523 = vmatprep.subr.mxu0 0.0
    %524 = vmatpush1.msra.mxu0 0.0
    %525 = vmatprep.subr.mxu0 0.0
    %526 = vmatpush1.msra.mxu0 0.0
    %527 = vmatprep.subr.mxu0 0.0
    %528 = vmatpush1.msra.mxu0 0.0
    %529 = vmatprep.subr.mxu0 0.0
    %530 = vmatpush1.msra.mxu0 0.0
    %531 = vmatprep.subr.mxu0 0.0
    %532 = vmatpush1.msra.mxu0 0.0
    %533 = vmatprep.subr.mxu0 0.0
    %534 = vmatpush1.msra.mxu0 0.0
    %535 = vmatprep.subr.mxu0 0.0
    %536 = vmatpush1.msra.mxu0 0.0
    %537 = vmatprep.subr.mxu0 0.0
    %538 = vmatpush1.msra.mxu0 0.0
    %539 = vmatprep.subr.mxu0 0.0
    %540 = vmatpush1.msra.mxu0 0.0
    %541 = vmatprep.subr.mxu0 0.0
    %542 = vmatpush1.msra.mxu0 0.0
    %543 = vmatprep.subr.mxu0 0.0
    %544 = vmatpush1.msra.mxu0 0.0
    %545 = vmatprep.subr.mxu0 0.0
    %546 = vmatpush1.msra.mxu0 0.0
    %547 = vmatprep.subr.mxu0 0.0
    %548 = vmatpush1.msra.mxu0 %v50
    %549 = vmatprep.subr.mxu0 0.0
    %550 = vmatpush1.msra.mxu0 %v49
    %551 = vmatprep.subr.mxu0 0.0
    %552 = vmatpush1.msra.mxu0 %v48
    %553 = vmatprep.subr.mxu0 0.0
    %554 = vmatpush1.msra.mxu0 %v47
    %555 = vmatprep.subr.mxu0 0.0
    %556 = vmatpush2.msra.mxu0 0.0
    %557 = vmatprep.subr.mxu0 0.0
    %558 = vmatpush2.msra.mxu0 0.0
    %559 = vmatprep.subr.mxu0 0.0
    %560 = vmatpush2.msra.mxu0 0.0
    %561 = vmatprep.subr.mxu0 0.0
    %562 = vmatpush2.msra.mxu0 0.0
    %563 = vmatprep.subr.mxu0 0.0
    %564 = vmatpush2.msra.mxu0 0.0
    %565 = vmatprep.subr.mxu0 0.0
    %566 = vmatpush2.msra.mxu0 0.0
    %567 = vmatprep.subr.mxu0 0.0
    %568 = vmatpush2.msra.mxu0 0.0
    %569 = vmatprep.subr.mxu0 0.0
    %570 = vmatpush2.msra.mxu0 0.0
    %571 = vmatprep.subr.mxu0 0.0
    %572 = vmatpush2.msra.mxu0 0.0
    %573 = vmatprep.subr.mxu0 0.0
    %574 = vmatpush2.msra.mxu0 0.0
    %575 = vmatprep.subr.mxu0 0.0
    %576 = vmatpush2.msra.mxu0 0.0
    %577 = vmatprep.subr.mxu0 0.0
    %578 = vmatpush2.msra.mxu0 0.0
    %579 = vmatprep.subr.mxu0 0.0
    %580 = vmatpush2.msra.mxu0 0.0
    %581 = vmatprep.subr.mxu0 0.0
    %582 = vmatpush2.msra.mxu0 0.0
    %583 = vmatprep.subr.mxu0 0.0
    %584 = vmatpush2.msra.mxu0 0.0
    %585 = vmatprep.subr.mxu0 0.0
    %586 = vmatpush2.msra.mxu0 0.0
    %587 = vmatprep.mubr.f32.mxu0 0.0
    %588 = vmatmul.mubr.f32.gmra.mxu0 %v521
    %v589 = vpop.f32.mrf.mxu0
    %v590 = vadd.f32 0.0, %v589
    %v591 = vpop.f32.mrf.mxu0
    %592 = vdwg.mxu0
    %v594 = vsel %vm352, %v56, 0
    %596 = vmatprep.subr.mxu0 0.0
    %597 = vmatpush1.xpose.msra.mxu0 0.0
    %598 = vmatprep.subr.mxu0 0.0
    %599 = vmatpush1.xpose.msra.mxu0 0.0
    %600 = vmatprep.subr.mxu0 0.0
    %601 = vmatpush1.xpose.msra.mxu0 0.0
    %602 = vmatprep.subr.mxu0 0.0
    %603 = vmatpush1.xpose.msra.mxu0 0.0
    %604 = vmatprep.subr.mxu0 0.0
    %605 = vmatpush1.xpose.msra.mxu0 0.0
    %606 = vmatprep.subr.mxu0 0.0
    %607 = vmatpush1.xpose.msra.mxu0 0.0
    %608 = vmatprep.subr.mxu0 0.0
    %609 = vmatpush1.xpose.msra.mxu0 0.0
    %610 = vmatprep.subr.mxu0 0.0
    %611 = vmatpush1.xpose.msra.mxu0 0.0
    %612 = vmatprep.subr.mxu0 0.0
    %613 = vmatpush1.xpose.msra.mxu0 0.0
    %614 = vmatprep.subr.mxu0 0.0
    %615 = vmatpush1.xpose.msra.mxu0 0.0
    %616 = vmatprep.subr.mxu0 0.0
    %617 = vmatpush1.xpose.msra.mxu0 0.0
    %618 = vmatprep.subr.mxu0 0.0
    %619 = vmatpush1.xpose.msra.mxu0 0.0
    %620 = vmatprep.subr.mxu0 0.0
    %621 = vmatpush1.xpose.msra.mxu0 0.0
    %622 = vmatprep.subr.mxu0 0.0
    %623 = vmatpush1.xpose.msra.mxu0 0.0
    %624 = vmatprep.subr.mxu0 0.0
    %625 = vmatpush1.xpose.msra.mxu0 0.0
    %626 = vmatprep.subr.mxu0 0.0
    %627 = vmatpush1.xpose.msra.mxu0 %v521
    %628 = vmatprep.subr.mxu0 0.0
    %629 = vmatpush2.xpose.msra.mxu0 0.0
    %630 = vmatprep.subr.mxu0 0.0
    %631 = vmatpush2.xpose.msra.mxu0 0.0
    %632 = vmatprep.subr.mxu0 0.0
    %633 = vmatpush2.xpose.msra.mxu0 0.0
    %634 = vmatprep.subr.mxu0 0.0
    %635 = vmatpush2.xpose.msra.mxu0 0.0
    %636 = vmatprep.subr.mxu0 0.0
    %637 = vmatpush2.xpose.msra.mxu0 0.0
    %638 = vmatprep.subr.mxu0 0.0
    %639 = vmatpush2.xpose.msra.mxu0 0.0
    %640 = vmatprep.subr.mxu0 0.0
    %641 = vmatpush2.xpose.msra.mxu0 0.0
    %642 = vmatprep.subr.mxu0 0.0
    %643 = vmatpush2.xpose.msra.mxu0 0.0
    %644 = vmatprep.subr.mxu0 0.0
    %645 = vmatpush2.xpose.msra.mxu0 0.0
    %646 = vmatprep.subr.mxu0 0.0
    %647 = vmatpush2.xpose.msra.mxu0 0.0
    %648 = vmatprep.subr.mxu0 0.0
    %649 = vmatpush2.xpose.msra.mxu0 0.0
    %650 = vmatprep.subr.mxu0 0.0
    %651 = vmatpush2.xpose.msra.mxu0 0.0
    %652 = vmatprep.subr.mxu0 0.0
    %653 = vmatpush2.xpose.msra.mxu0 0.0
    %654 = vmatprep.subr.mxu0 0.0
    %655 = vmatpush2.xpose.msra.mxu0 0.0
    %656 = vmatprep.subr.mxu0 0.0
    %657 = vmatpush2.xpose.msra.mxu0 0.0
    %658 = vmatprep.subr.mxu0 0.0
    %659 = vmatpush2.xpose.msra.mxu0 0.0
    %660 = vmatprep.mubr.f32.mxu0 0.0
    %661 = vmatmul.mubr.f32.gmra.mxu0 %v594
    %v662 = vpop.f32.mrf.mxu0
    %v663 = vadd.f32 0.0, %v662
    %v664 = vpop.f32.mrf.mxu0
    %665 = vdwg.mxu0
    %v666 = vld [vmem:[%s1] sm:$0xf]
    %v667 = vld [vmem:[%s1 + $0x8] sm:$0xf]
    %668 = vxpose.xlu0.b32.start [1/16] %v55, 128
    %669 = vxpose.xlu0.b32.cont [2/16] 0.0, 128
    %670 = vxpose.xlu0.b32.cont [3/16] 0.0, 128
    %671 = vxpose.xlu0.b32.cont [4/16] 0.0, 128
    %672 = vxpose.xlu0.b32.cont [5/16] 0.0, 128
    %673 = vxpose.xlu0.b32.cont [6/16] 0.0, 128
    %674 = vxpose.xlu0.b32.cont [7/16] 0.0, 128
    %675 = vxpose.xlu0.b32.cont [8/16] 0.0, 128
    %676 = vxpose.xlu0.b32.cont [9/16] 0.0, 128
    %677 = vxpose.xlu0.b32.cont [10/16] 0.0, 128
    %678 = vxpose.xlu0.b32.cont [11/16] 0.0, 128
    %679 = vxpose.xlu0.b32.cont [12/16] 0.0, 128
    %680 = vxpose.xlu0.b32.cont [13/16] 0.0, 128
    %681 = vxpose.xlu0.b32.cont [14/16] 0.0, 128
    %682 = vxpose.xlu0.b32.cont [15/16] 0.0, 128
    %683 = vxpose.xlu0.b32.end [16/16] 0.0, 128
    %v684 = vpop.trf.xlu0
    %v685 = vpop.trf.xlu0
    %v686 = vpop.trf.xlu0
    %v687 = vpop.trf.xlu0
    %v688 = vpop.trf.xlu0
    %v689 = vpop.trf.xlu0
    %v690 = vpop.trf.xlu0
    %v691 = vpop.trf.xlu0
    %v692 = vpop.trf.xlu0
    %v693 = vpop.trf.xlu0
    %v694 = vpop.trf.xlu0
    %v695 = vpop.trf.xlu0
    %v696 = vpop.trf.xlu0
    %v697 = vpop.trf.xlu0
    %v698 = vpop.trf.xlu0
    %v699 = vpop.trf.xlu0
    %vm700 = vcmask 31744
    %v702 = vsel %vm700, %v684, 0
    %v705 = vsel %vm700, %v685, 0
    %v708 = vsel %vm700, %v686, 0
    %v711 = vsel %vm700, %v687, 0
    %v714 = vsel %vm343, %v666, 0
    %v717 = vsel %vm343, %v667, 0
    %719 = vmatprep.subr.mxu0 0.0
    %720 = vmatpush1.msra.mxu0 0.0
    %721 = vmatprep.subr.mxu0 0.0
    %722 = vmatpush1.msra.mxu0 0.0
    %723 = vmatprep.subr.mxu0 0.0
    %724 = vmatpush1.msra.mxu0 0.0
    %725 = vmatprep.subr.mxu0 0.0
    %726 = vmatpush1.msra.mxu0 0.0
    %727 = vmatprep.subr.mxu0 0.0
    %728 = vmatpush1.msra.mxu0 0.0
    %729 = vmatprep.subr.mxu0 0.0
    %730 = vmatpush1.msra.mxu0 0.0
    %731 = vmatprep.subr.mxu0 0.0
    %732 = vmatpush1.msra.mxu0 0.0
    %733 = vmatprep.subr.mxu0 0.0
    %734 = vmatpush1.msra.mxu0 0.0
    %735 = vmatprep.subr.mxu0 0.0
    %736 = vmatpush1.msra.mxu0 0.0
    %737 = vmatprep.subr.mxu0 0.0
    %738 = vmatpush1.msra.mxu0 0.0
    %739 = vmatprep.subr.mxu0 0.0
    %740 = vmatpush1.msra.mxu0 0.0
    %741 = vmatprep.subr.mxu0 0.0
    %742 = vmatpush1.msra.mxu0 0.0
    %743 = vmatprep.subr.mxu0 0.0
    %744 = vmatpush1.msra.mxu0 0.0
    %745 = vmatprep.subr.mxu0 0.0
    %746 = vmatpush1.msra.mxu0 0.0
    %747 = vmatprep.subr.mxu0 0.0
    %748 = vmatpush1.msra.mxu0 0.0
    %749 = vmatprep.subr.mxu0 %v717
    %750 = vmatpush1.msra.mxu0 %v714
    %751 = vmatprep.subr.mxu0 0.0
    %752 = vmatpush2.msra.mxu0 0.0
    %753 = vmatprep.subr.mxu0 0.0
    %754 = vmatpush2.msra.mxu0 0.0
    %755 = vmatprep.subr.mxu0 0.0
    %756 = vmatpush2.msra.mxu0 0.0
    %757 = vmatprep.subr.mxu0 0.0
    %758 = vmatpush2.msra.mxu0 0.0
    %759 = vmatprep.subr.mxu0 0.0
    %760 = vmatpush2.msra.mxu0 0.0
    %761 = vmatprep.subr.mxu0 0.0
    %762 = vmatpush2.msra.mxu0 0.0
    %763 = vmatprep.subr.mxu0 0.0
    %764 = vmatpush2.msra.mxu0 0.0
    %765 = vmatprep.subr.mxu0 0.0
    %766 = vmatpush2.msra.mxu0 0.0
    %767 = vmatprep.subr.mxu0 0.0
    %768 = vmatpush2.msra.mxu0 0.0
    %769 = vmatprep.subr.mxu0 0.0
    %770 = vmatpush2.msra.mxu0 0.0
    %771 = vmatprep.subr.mxu0 0.0
    %772 = vmatpush2.msra.mxu0 0.0
    %773 = vmatprep.subr.mxu0 0.0
    %774 = vmatpush2.msra.mxu0 0.0
    %775 = vmatprep.subr.mxu0 0.0
    %776 = vmatpush2.msra.mxu0 0.0
    %777 = vmatprep.subr.mxu0 0.0
    %778 = vmatpush2.msra.mxu0 0.0
    %779 = vmatprep.subr.mxu0 0.0
    %780 = vmatpush2.msra.mxu0 0.0
    %781 = vmatprep.subr.mxu0 0.0
    %782 = vmatpush2.msra.mxu0 0.0
    %783 = vmatprep.mubr.f32.mxu0 0.0
    %784 = vmatmul.mubr.f32.gmra.mxu0 %v702
    %v785 = vpop.f32.mrf.mxu0
    %v786 = vadd.f32 0.0, %v785
    %v787 = vpop.f32.mrf.mxu0
    %v788 = vadd.f32 0.0, %v787
    %789 = vmatprep.mubr.f32.mxu0 0.0
    %790 = vmatmul.mubr.f32.gmra.mxu0 %v705
    %v791 = vpop.f32.mrf.mxu0
    %v792 = vadd.f32 0.0, %v791
    %v793 = vpop.f32.mrf.mxu0
    %v794 = vadd.f32 0.0, %v793
    %795 = vmatprep.mubr.f32.mxu0 0.0
    %796 = vmatmul.mubr.f32.gmra.mxu0 %v708
    %v797 = vpop.f32.mrf.mxu0
    %v798 = vadd.f32 0.0, %v797
    %v799 = vpop.f32.mrf.mxu0
    %v800 = vadd.f32 0.0, %v799
    %801 = vmatprep.mubr.f32.mxu0 0.0
    %802 = vmatmul.mubr.f32.gmra.mxu0 %v711
    %v803 = vpop.f32.mrf.mxu0
    %v804 = vadd.f32 0.0, %v803
    %v805 = vpop.f32.mrf.mxu0
    %v806 = vadd.f32 0.0, %v805
    %807 = vdwg.mxu0
    %v808 = vlaneseq
    %v809 = vshrl.u32 %v808, 7
    %v810 = vsub.s32 0, %v809
    %v811 = vrot.slane %v590, %v810
    %v812 = vmul.f32 %v429, %v811
    %v813 = vmul.f32 %v434, %v811
    %v814 = vsel %vm352, %v812, 0.0
    %815 = vadd.xlane.f32.xlu0 %v814
    %v816 = vpop.xlane.xlu0 %815
    %vm817 = vcmask 257024
    %v818 = vsel %vm817, %v813, 0.0
    %819 = vadd.xlane.f32.xlu0 %v818
    %v820 = vpop.xlane.xlu0 %819
    %v822 = vsel %vm352, %v429, 0
    %v825 = vsel %vm352, %v434, 0
    %827 = vmatprep.subr.mxu0 0.0
    %828 = vmatpush1.msra.mxu0 0.0
    %829 = vmatprep.subr.mxu0 0.0
    %830 = vmatpush1.msra.mxu0 0.0
    %831 = vmatprep.subr.mxu0 0.0
    %832 = vmatpush1.msra.mxu0 0.0
    %833 = vmatprep.subr.mxu0 0.0
    %834 = vmatpush1.msra.mxu0 0.0
    %835 = vmatprep.subr.mxu0 0.0
    %836 = vmatpush1.msra.mxu0 0.0
    %837 = vmatprep.subr.mxu0 0.0
    %838 = vmatpush1.msra.mxu0 0.0
    %839 = vmatprep.subr.mxu0 0.0
    %840 = vmatpush1.msra.mxu0 0.0
    %841 = vmatprep.subr.mxu0 0.0
    %842 = vmatpush1.msra.mxu0 0.0
    %843 = vmatprep.subr.mxu0 0.0
    %844 = vmatpush1.msra.mxu0 0.0
    %845 = vmatprep.subr.mxu0 0.0
    %846 = vmatpush1.msra.mxu0 0.0
    %847 = vmatprep.subr.mxu0 0.0
    %848 = vmatpush1.msra.mxu0 0.0
    %849 = vmatprep.subr.mxu0 0.0
    %850 = vmatpush1.msra.mxu0 0.0
    %851 = vmatprep.subr.mxu0 %v806
    %852 = vmatpush1.msra.mxu0 %v804
    %853 = vmatprep.subr.mxu0 %v800
    %854 = vmatpush1.msra.mxu0 %v798
    %855 = vmatprep.subr.mxu0 %v794
    %856 = vmatpush1.msra.mxu0 %v792
    %857 = vmatprep.subr.mxu0 %v788
    %858 = vmatpush1.msra.mxu0 %v786
    %859 = vmatprep.subr.mxu0 0.0
    %860 = vmatpush2.msra.mxu0 0.0
    %861 = vmatprep.subr.mxu0 0.0
    %862 = vmatpush2.msra.mxu0 0.0
    %863 = vmatprep.subr.mxu0 0.0
    %864 = vmatpush2.msra.mxu0 0.0
    %865 = vmatprep.subr.mxu0 0.0
    %866 = vmatpush2.msra.mxu0 0.0
    %867 = vmatprep.subr.mxu0 0.0
    %868 = vmatpush2.msra.mxu0 0.0
    %869 = vmatprep.subr.mxu0 0.0
    %870 = vmatpush2.msra.mxu0 0.0
    %871 = vmatprep.subr.mxu0 0.0
    %872 = vmatpush2.msra.mxu0 0.0
    %873 = vmatprep.subr.mxu0 0.0
    %874 = vmatpush2.msra.mxu0 0.0
    %875 = vmatprep.subr.mxu0 0.0
    %876 = vmatpush2.msra.mxu0 0.0
    %877 = vmatprep.subr.mxu0 0.0
    %878 = vmatpush2.msra.mxu0 0.0
    %879 = vmatprep.subr.mxu0 0.0
    %880 = vmatpush2.msra.mxu0 0.0
    %881 = vmatprep.subr.mxu0 0.0
    %882 = vmatpush2.msra.mxu0 0.0
    %883 = vmatprep.subr.mxu0 0.0
    %884 = vmatpush2.msra.mxu0 0.0
    %885 = vmatprep.subr.mxu0 0.0
    %886 = vmatpush2.msra.mxu0 0.0
    %887 = vmatprep.subr.mxu0 0.0
    %888 = vmatpush2.msra.mxu0 0.0
    %889 = vmatprep.subr.mxu0 0.0
    %890 = vmatpush2.msra.mxu0 0.0
    %891 = vmatprep.mubr.f32.mxu0 0.0
    %892 = vmatmul.mubr.f32.gmra.mxu0 %v822
    %v893 = vpop.f32.mrf.mxu0
    %v894 = vadd.f32 %v816, %v893
    %v895 = vpop.f32.mrf.mxu0
    %v896 = vadd.f32 %v816, %v895
    %897 = vmatprep.mubr.f32.mxu0 0.0
    %898 = vmatmul.mubr.f32.gmra.mxu0 %v825
    %v899 = vpop.f32.mrf.mxu0
    %v900 = vadd.f32 %v820, %v899
    %v901 = vpop.f32.mrf.mxu0
    %v902 = vadd.f32 %v820, %v901
    %903 = vdwg.mxu0
    %v904 = vsel %vm343, %v900, -inf
    %v905 = vmax.f32 %v894, %v904
    %v906 = vrot.slane %v905, 4
    %v907 = vmax.f32 %v905, %v906
    %v908 = vrot.slane %v907, 2
    %v909 = vmax.f32 %v907, %v908
    %v910 = vrot.slane %v909, 1
    %v911 = vmax.f32 %v909, %v910
    %v912 = vsel %vm343, %v902, -inf
    %v913 = vmax.f32 %v896, %v912
    %v914 = vrot.slane %v913, 4
    %v915 = vmax.f32 %v913, %v914
    %v916 = vrot.slane %v915, 2
    %v917 = vmax.f32 %v915, %v916
    %v918 = vrot.slane %v917, 1
    %v919 = vmax.f32 %v917, %v918
    %v920 = vsub.f32 %v894, %v911
    %v921 = vsub.f32 %v896, %v919
    %v922 = vsub.f32 %v900, %v911
    %v923 = vsub.f32 %v902, %v919
    %v924 = vmul.f32 %v920, 1.442695
    %v925 = vpow.pop %v924
    %v926 = vmul.f32 %v921, 1.442695
    %v927 = vpow.pop %v926
    %v928 = vmul.f32 %v922, 1.442695
    %v929 = vpow.pop %v928
    %v930 = vmul.f32 %v923, 1.442695
    %v931 = vpow.pop %v930
    %v932 = vsel %vm343, %v929, 0.0
    %v933 = vadd.f32 %v925, %v932
    %v934 = vrot.slane %v933, 4
    %v935 = vadd.f32 %v933, %v934
    %v936 = vrot.slane %v935, 2
    %v937 = vadd.f32 %v935, %v936
    %v938 = vrot.slane %v937, 1
    %v939 = vadd.f32 %v937, %v938
    %v940 = vsel %vm343, %v931, 0.0
    %v941 = vadd.f32 %v927, %v940
    %v942 = vrot.slane %v941, 4
    %v943 = vadd.f32 %v941, %v942
    %v944 = vrot.slane %v943, 2
    %v945 = vadd.f32 %v943, %v944
    %v946 = vrot.slane %v945, 1
    %v947 = vadd.f32 %v945, %v946
    %v948 = vrcp.pop %v939
    %v949 = vrcp.pop %v947
    %v950 = vmul.f32 %v925, %v948
    %v951 = vmul.f32 %v927, %v949
    %v952 = vmul.f32 %v929, %v948
    %v953 = vmul.f32 %v931, %v949
    %954 = vrot.lane.b32.xlu0 %v429, 96
    %v955 = vpop.permute.xlu0 %954
    %956 = vrot.lane.b32.xlu0 %v434, 96
    %v957 = vpop.permute.xlu0 %956
    %v958 = vsel %vm352, %v955, 0
    %v960 = vsel %vm352, %v957, 0
    %962 = vmatprep.subr.mxu0 0.0
    %963 = vmatpush1.xpose.msra.mxu0 0.0
    %964 = vmatprep.subr.mxu0 0.0
    %965 = vmatpush1.xpose.msra.mxu0 0.0
    %966 = vmatprep.subr.mxu0 0.0
    %967 = vmatpush1.xpose.msra.mxu0 0.0
    %968 = vmatprep.subr.mxu0 0.0
    %969 = vmatpush1.xpose.msra.mxu0 0.0
    %970 = vmatprep.subr.mxu0 0.0
    %971 = vmatpush1.xpose.msra.mxu0 0.0
    %972 = vmatprep.subr.mxu0 0.0
    %973 = vmatpush1.xpose.msra.mxu0 0.0
    %974 = vmatprep.subr.mxu0 0.0
    %975 = vmatpush1.xpose.msra.mxu0 0.0
    %976 = vmatprep.subr.mxu0 0.0
    %977 = vmatpush1.xpose.msra.mxu0 0.0
    %978 = vmatprep.subr.mxu0 0.0
    %979 = vmatpush1.xpose.msra.mxu0 0.0
    %980 = vmatprep.subr.mxu0 0.0
    %981 = vmatpush1.xpose.msra.mxu0 0.0
    %982 = vmatprep.subr.mxu0 0.0
    %983 = vmatpush1.xpose.msra.mxu0 0.0
    %984 = vmatprep.subr.mxu0 0.0
    %985 = vmatpush1.xpose.msra.mxu0 0.0
    %986 = vmatprep.subr.mxu0 0.0
    %987 = vmatpush1.xpose.msra.mxu0 0.0
    %988 = vmatprep.subr.mxu0 0.0
    %989 = vmatpush1.xpose.msra.mxu0 0.0
    %990 = vmatprep.subr.mxu0 0.0
    %991 = vmatpush1.xpose.msra.mxu0 %v960
    %992 = vmatprep.subr.mxu0 0.0
    %993 = vmatpush1.xpose.msra.mxu0 %v958
    %994 = vmatprep.subr.mxu0 0.0
    %995 = vmatpush2.xpose.msra.mxu0 0.0
    %996 = vmatprep.subr.mxu0 0.0
    %997 = vmatpush2.xpose.msra.mxu0 0.0
    %998 = vmatprep.subr.mxu0 0.0
    %999 = vmatpush2.xpose.msra.mxu0 0.0
    %1000 = vmatprep.subr.mxu0 0.0
    %1001 = vmatpush2.xpose.msra.mxu0 0.0
    %1002 = vmatprep.subr.mxu0 0.0
    %1003 = vmatpush2.xpose.msra.mxu0 0.0
    %1004 = vmatprep.subr.mxu0 0.0
    %1005 = vmatpush2.xpose.msra.mxu0 0.0
    %1006 = vmatprep.subr.mxu0 0.0
    %1007 = vmatpush2.xpose.msra.mxu0 0.0
    %1008 = vmatprep.subr.mxu0 0.0
    %1009 = vmatpush2.xpose.msra.mxu0 0.0
    %1010 = vmatprep.subr.mxu0 0.0
    %1011 = vmatpush2.xpose.msra.mxu0 0.0
    %1012 = vmatprep.subr.mxu0 0.0
    %1013 = vmatpush2.xpose.msra.mxu0 0.0
    %1014 = vmatprep.subr.mxu0 0.0
    %1015 = vmatpush2.xpose.msra.mxu0 0.0
    %1016 = vmatprep.subr.mxu0 0.0
    %1017 = vmatpush2.xpose.msra.mxu0 0.0
    %1018 = vmatprep.subr.mxu0 0.0
    %1019 = vmatpush2.xpose.msra.mxu0 0.0
    %1020 = vmatprep.subr.mxu0 0.0
    %1021 = vmatpush2.xpose.msra.mxu0 0.0
    %1022 = vmatprep.subr.mxu0 0.0
    %1023 = vmatpush2.xpose.msra.mxu0 0.0
    %1024 = vmatprep.subr.mxu0 0.0
    %1025 = vmatpush2.xpose.msra.mxu0 0.0
    %1026 = vmatprep.mubr.f32.mxu0 0.0
    %1027 = vmatmul.mubr.f32.gmra.mxu0 %v594
    %v1028 = vpop.f32.mrf.mxu0
    %v1029 = vadd.f32 0.0, %v1028
    %v1030 = vpop.f32.mrf.mxu0
    %1031 = vdwg.mxu0
    %vm1032 = vcmask 97280
    %v1034 = vsel %vm1032, %v1029, 0
    %v1037 = vsel %vm343, %v952, 0
    %v1040 = vsel %vm343, %v953, 0
    %1042 = vmatprep.subr.mxu0 0.0
    %1043 = vmatpush1.msra.mxu0 0.0
    %1044 = vmatprep.subr.mxu0 0.0
    %1045 = vmatpush1.msra.mxu0 0.0
    %1046 = vmatprep.subr.mxu0 0.0
    %1047 = vmatpush1.msra.mxu0 0.0
    %1048 = vmatprep.subr.mxu0 0.0
    %1049 = vmatpush1.msra.mxu0 0.0
    %1050 = vmatprep.subr.mxu0 0.0
    %1051 = vmatpush1.msra.mxu0 0.0
    %1052 = vmatprep.subr.mxu0 0.0
    %1053 = vmatpush1.msra.mxu0 0.0
    %1054 = vmatprep.subr.mxu0 0.0
    %1055 = vmatpush1.msra.mxu0 0.0
    %1056 = vmatprep.subr.mxu0 0.0
    %1057 = vmatpush1.msra.mxu0 0.0
    %1058 = vmatprep.subr.mxu0 0.0
    %1059 = vmatpush1.msra.mxu0 0.0
    %1060 = vmatprep.subr.mxu0 0.0
    %1061 = vmatpush1.msra.mxu0 0.0
    %1062 = vmatprep.subr.mxu0 0.0
    %1063 = vmatpush1.msra.mxu0 0.0
    %1064 = vmatprep.subr.mxu0 0.0
    %1065 = vmatpush1.msra.mxu0 0.0
    %1066 = vmatprep.subr.mxu0 0.0
    %1067 = vmatpush1.msra.mxu0 0.0
    %1068 = vmatprep.subr.mxu0 0.0
    %1069 = vmatpush1.msra.mxu0 0.0
    %1070 = vmatprep.subr.mxu0 %v1040
    %1071 = vmatpush1.msra.mxu0 %v1037
    %1072 = vmatprep.subr.mxu0 %v951
    %1073 = vmatpush1.msra.mxu0 %v950
    %1074 = vmatprep.subr.mxu0 0.0
    %1075 = vmatpush2.msra.mxu0 0.0
    %1076 = vmatprep.subr.mxu0 0.0
    %1077 = vmatpush2.msra.mxu0 0.0
    %1078 = vmatprep.subr.mxu0 0.0
    %1079 = vmatpush2.msra.mxu0 0.0
    %1080 = vmatprep.subr.mxu0 0.0
    %1081 = vmatpush2.msra.mxu0 0.0
    %1082 = vmatprep.subr.mxu0 0.0
    %1083 = vmatpush2.msra.mxu0 0.0
    %1084 = vmatprep.subr.mxu0 0.0
    %1085 = vmatpush2.msra.mxu0 0.0
    %1086 = vmatprep.subr.mxu0 0.0
    %1087 = vmatpush2.msra.mxu0 0.0
    %1088 = vmatprep.subr.mxu0 0.0
    %1089 = vmatpush2.msra.mxu0 0.0
    %1090 = vmatprep.subr.mxu0 0.0
    %1091 = vmatpush2.msra.mxu0 0.0
    %1092 = vmatprep.subr.mxu0 0.0
    %1093 = vmatpush2.msra.mxu0 0.0
    %1094 = vmatprep.subr.mxu0 0.0
    %1095 = vmatpush2.msra.mxu0 0.0
    %1096 = vmatprep.subr.mxu0 0.0
    %1097 = vmatpush2.msra.mxu0 0.0
    %1098 = vmatprep.subr.mxu0 0.0
    %1099 = vmatpush2.msra.mxu0 0.0
    %1100 = vmatprep.subr.mxu0 0.0
    %1101 = vmatpush2.msra.mxu0 0.0
    %1102 = vmatprep.subr.mxu0 0.0
    %1103 = vmatpush2.msra.mxu0 0.0
    %1104 = vmatprep.subr.mxu0 0.0
    %1105 = vmatpush2.msra.mxu0 0.0
    %1106 = vmatprep.mubr.f32.mxu0 0.0
    %1107 = vmatmul.mubr.f32.gmra.mxu0 %v1034
    %v1108 = vpop.f32.mrf.mxu0
    %v1109 = vadd.f32 0.0, %v1108
    %v1110 = vpop.f32.mrf.mxu0
    %v1111 = vadd.f32 0.0, %v1110
    %1112 = vdwg.mxu0
    %1114 = vrot.lane.b32.xlu0 %v55, 96
    %v1115 = vpop.permute.xlu0 %1114
    %v1116 = vsel %vm700, %v1115, 0
    %1118 = vmatprep.subr.mxu0 0.0
    %1119 = vmatpush1.msra.mxu0 0.0
    %1120 = vmatprep.subr.mxu0 0.0
    %1121 = vmatpush1.msra.mxu0 0.0
    %1122 = vmatprep.subr.mxu0 0.0
    %1123 = vmatpush1.msra.mxu0 0.0
    %1124 = vmatprep.subr.mxu0 0.0
    %1125 = vmatpush1.msra.mxu0 0.0
    %1126 = vmatprep.subr.mxu0 0.0
    %1127 = vmatpush1.msra.mxu0 0.0
    %1128 = vmatprep.subr.mxu0 0.0
    %1129 = vmatpush1.msra.mxu0 0.0
    %1130 = vmatprep.subr.mxu0 0.0
    %1131 = vmatpush1.msra.mxu0 0.0
    %1132 = vmatprep.subr.mxu0 0.0
    %1133 = vmatpush1.msra.mxu0 0.0
    %1134 = vmatprep.subr.mxu0 0.0
    %1135 = vmatpush1.msra.mxu0 0.0
    %1136 = vmatprep.subr.mxu0 0.0
    %1137 = vmatpush1.msra.mxu0 0.0
    %1138 = vmatprep.subr.mxu0 0.0
    %1139 = vmatpush1.msra.mxu0 0.0
    %1140 = vmatprep.subr.mxu0 0.0
    %1141 = vmatpush1.msra.mxu0 0.0
    %1142 = vmatprep.subr.mxu0 0.0
    %1143 = vmatpush1.msra.mxu0 0.0
    %1144 = vmatprep.subr.mxu0 0.0
    %1145 = vmatpush1.msra.mxu0 0.0
    %1146 = vmatprep.subr.mxu0 0.0
    %1147 = vmatpush1.msra.mxu0 0.0
    %1148 = vmatprep.subr.mxu0 %v717
    %1149 = vmatpush1.msra.mxu0 %v714
    %1150 = vmatprep.subr.mxu0 0.0
    %1151 = vmatpush2.msra.mxu0 0.0
    %1152 = vmatprep.subr.mxu0 0.0
    %1153 = vmatpush2.msra.mxu0 0.0
    %1154 = vmatprep.subr.mxu0 0.0
    %1155 = vmatpush2.msra.mxu0 0.0
    %1156 = vmatprep.subr.mxu0 0.0
    %1157 = vmatpush2.msra.mxu0 0.0
    %1158 = vmatprep.subr.mxu0 0.0
    %1159 = vmatpush2.msra.mxu0 0.0
    %1160 = vmatprep.subr.mxu0 0.0
    %1161 = vmatpush2.msra.mxu0 0.0
    %1162 = vmatprep.subr.mxu0 0.0
    %1163 = vmatpush2.msra.mxu0 0.0
    %1164 = vmatprep.subr.mxu0 0.0
    %1165 = vmatpush2.msra.mxu0 0.0
    %1166 = vmatprep.subr.mxu0 0.0
    %1167 = vmatpush2.msra.mxu0 0.0
    %1168 = vmatprep.subr.mxu0 0.0
    %1169 = vmatpush2.msra.mxu0 0.0
    %1170 = vmatprep.subr.mxu0 0.0
    %1171 = vmatpush2.msra.mxu0 0.0
    %1172 = vmatprep.subr.mxu0 0.0
    %1173 = vmatpush2.msra.mxu0 0.0
    %1174 = vmatprep.subr.mxu0 0.0
    %1175 = vmatpush2.msra.mxu0 0.0
    %1176 = vmatprep.subr.mxu0 0.0
    %1177 = vmatpush2.msra.mxu0 0.0
    %1178 = vmatprep.subr.mxu0 0.0
    %1179 = vmatpush2.msra.mxu0 0.0
    %1180 = vmatprep.subr.mxu0 0.0
    %1181 = vmatpush2.msra.mxu0 0.0
    %1182 = vmatprep.mubr.f32.mxu0 0.0
    %1183 = vmatmul.mubr.f32.gmra.mxu0 %v1116
    %v1184 = vpop.f32.mrf.mxu0
    %v1185 = vadd.f32 %v1109, %v1184
    %v1186 = vpop.f32.mrf.mxu0
    %v1187 = vadd.f32 %v1111, %v1186
    %1188 = vdwg.mxu0
    %1190 = vset.pattern.permute.xlu0 0
    %1191 = vperm.xlu0 %1190, %v663
    %v1192 = vpop.permute.xlu0 %1191
    %v1194 = vadd.f32 %v1185, %v1192
    %v1195 = vadd.f32 %v1187, %v1192
    %1196 = vset.pattern.permute.xlu0 32
    %1197 = vperm.xlu0 %1196, %v56
    %v1198 = vpop.permute.xlu0 %1197
    %v1200 = vadd.f32 %v1194, %v1198
    %v1201 = vadd.f32 %v1195, %v1198
    %v1202 = vld [vmem:[%s1] sm:$0xf0]
    %v1203 = vld [vmem:[%s1 + $0x8] sm:$0xf0]
    %v1206 = vrot.slane %v1202, 4
    %v1207 = vrot.slane %v1203, 4
    %v1208 = vsel %vm343, %v1206, 0
    %v1210 = vsel %vm343, %v1207, 0
    %1212 = vmatprep.subr.mxu0 0.0
    %1213 = vmatpush1.msra.mxu0 0.0
    %1214 = vmatprep.subr.mxu0 0.0
    %1215 = vmatpush1.msra.mxu0 0.0
    %1216 = vmatprep.subr.mxu0 0.0
    %1217 = vmatpush1.msra.mxu0 0.0
    %1218 = vmatprep.subr.mxu0 0.0
    %1219 = vmatpush1.msra.mxu0 0.0
    %1220 = vmatprep.subr.mxu0 0.0
    %1221 = vmatpush1.msra.mxu0 0.0
    %1222 = vmatprep.subr.mxu0 0.0
    %1223 = vmatpush1.msra.mxu0 0.0
    %1224 = vmatprep.subr.mxu0 0.0
    %1225 = vmatpush1.msra.mxu0 0.0
    %1226 = vmatprep.subr.mxu0 0.0
    %1227 = vmatpush1.msra.mxu0 0.0
    %1228 = vmatprep.subr.mxu0 0.0
    %1229 = vmatpush1.msra.mxu0 0.0
    %1230 = vmatprep.subr.mxu0 0.0
    %1231 = vmatpush1.msra.mxu0 0.0
    %1232 = vmatprep.subr.mxu0 0.0
    %1233 = vmatpush1.msra.mxu0 0.0
    %1234 = vmatprep.subr.mxu0 0.0
    %1235 = vmatpush1.msra.mxu0 0.0
    %1236 = vmatprep.subr.mxu0 0.0
    %1237 = vmatpush1.msra.mxu0 0.0
    %1238 = vmatprep.subr.mxu0 0.0
    %1239 = vmatpush1.msra.mxu0 0.0
    %1240 = vmatprep.subr.mxu0 0.0
    %1241 = vmatpush1.msra.mxu0 0.0
    %1242 = vmatprep.subr.mxu0 %v1210
    %1243 = vmatpush1.msra.mxu0 %v1208
    %1244 = vmatprep.subr.mxu0 0.0
    %1245 = vmatpush2.msra.mxu0 0.0
    %1246 = vmatprep.subr.mxu0 0.0
    %1247 = vmatpush2.msra.mxu0 0.0
    %1248 = vmatprep.subr.mxu0 0.0
    %1249 = vmatpush2.msra.mxu0 0.0
    %1250 = vmatprep.subr.mxu0 0.0
    %1251 = vmatpush2.msra.mxu0 0.0
    %1252 = vmatprep.subr.mxu0 0.0
    %1253 = vmatpush2.msra.mxu0 0.0
    %1254 = vmatprep.subr.mxu0 0.0
    %1255 = vmatpush2.msra.mxu0 0.0
    %1256 = vmatprep.subr.mxu0 0.0
    %1257 = vmatpush2.msra.mxu0 0.0
    %1258 = vmatprep.subr.mxu0 0.0
    %1259 = vmatpush2.msra.mxu0 0.0
    %1260 = vmatprep.subr.mxu0 0.0
    %1261 = vmatpush2.msra.mxu0 0.0
    %1262 = vmatprep.subr.mxu0 0.0
    %1263 = vmatpush2.msra.mxu0 0.0
    %1264 = vmatprep.subr.mxu0 0.0
    %1265 = vmatpush2.msra.mxu0 0.0
    %1266 = vmatprep.subr.mxu0 0.0
    %1267 = vmatpush2.msra.mxu0 0.0
    %1268 = vmatprep.subr.mxu0 0.0
    %1269 = vmatpush2.msra.mxu0 0.0
    %1270 = vmatprep.subr.mxu0 0.0
    %1271 = vmatpush2.msra.mxu0 0.0
    %1272 = vmatprep.subr.mxu0 0.0
    %1273 = vmatpush2.msra.mxu0 0.0
    %1274 = vmatprep.subr.mxu0 0.0
    %1275 = vmatpush2.msra.mxu0 0.0
    %1276 = vmatprep.mubr.f32.mxu0 0.0
    %1277 = vmatmul.mubr.f32.gmra.mxu0 %v702
    %v1278 = vpop.f32.mrf.mxu0
    %v1279 = vadd.f32 0.0, %v1278
    %v1280 = vpop.f32.mrf.mxu0
    %v1281 = vadd.f32 0.0, %v1280
    %1282 = vmatprep.mubr.f32.mxu0 0.0
    %1283 = vmatmul.mubr.f32.gmra.mxu0 %v705
    %v1284 = vpop.f32.mrf.mxu0
    %v1285 = vadd.f32 0.0, %v1284
    %v1286 = vpop.f32.mrf.mxu0
    %v1287 = vadd.f32 0.0, %v1286
    %1288 = vmatprep.mubr.f32.mxu0 0.0
    %1289 = vmatmul.mubr.f32.gmra.mxu0 %v708
    %v1290 = vpop.f32.mrf.mxu0
    %v1291 = vadd.f32 0.0, %v1290
    %v1292 = vpop.f32.mrf.mxu0
    %v1293 = vadd.f32 0.0, %v1292
    %1294 = vmatprep.mubr.f32.mxu0 0.0
    %1295 = vmatmul.mubr.f32.gmra.mxu0 %v711
    %v1296 = vpop.f32.mrf.mxu0
    %v1297 = vadd.f32 0.0, %v1296
    %v1298 = vpop.f32.mrf.mxu0
    %v1299 = vadd.f32 0.0, %v1298
    %1300 = vdwg.mxu0
    %v1301 = vlaneseq
    %v1302 = vshrl.u32 %v1301, 7
    %v1303 = vsub.s32 1, %v1302
    %v1304 = vrot.slane %v590, %v1303
    %v1305 = vmul.f32 %v434, %v1304
    %v1306 = vmul.f32 %v439, %v1304
    %vm1307 = vcmask 261124
    %v1308 = vsel %vm1307, %v1305, 0.0
    %1309 = vadd.xlane.f32.xlu0 %v1308
    %v1310 = vpop.xlane.xlu0 %1309
    %v1311 = vsel %vm352, %v1306, 0.0
    %1312 = vadd.xlane.f32.xlu0 %v1311
    %v1313 = vpop.xlane.xlu0 %1312
    %v1315 = vrot.slane %v434, 4
    %v1316 = vrot.slane %v439, 4
    %v1317 = vsel %vm343, %v1315, %v1316
    %v1320 = vrot.slane %v1310, 4
    %v1321 = vrot.slane %v1313, 4
    %v1322 = vsel %vm343, %v1320, %v1321
    %v1325 = vsel %vm352, %v1317, 0
    %v1327 = vsel %vm352, %v1316, 0
    %1329 = vmatprep.subr.mxu0 0.0
    %1330 = vmatpush1.msra.mxu0 0.0
    %1331 = vmatprep.subr.mxu0 0.0
    %1332 = vmatpush1.msra.mxu0 0.0
    %1333 = vmatprep.subr.mxu0 0.0
    %1334 = vmatpush1.msra.mxu0 0.0
    %1335 = vmatprep.subr.mxu0 0.0
    %1336 = vmatpush1.msra.mxu0 0.0
    %1337 = vmatprep.subr.mxu0 0.0
    %1338 = vmatpush1.msra.mxu0 0.0
    %1339 = vmatprep.subr.mxu0 0.0
    %1340 = vmatpush1.msra.mxu0 0.0
    %1341 = vmatprep.subr.mxu0 0.0
    %1342 = vmatpush1.msra.mxu0 0.0
    %1343 = vmatprep.subr.mxu0 0.0
    %1344 = vmatpush1.msra.mxu0 0.0
    %1345 = vmatprep.subr.mxu0 0.0
    %1346 = vmatpush1.msra.mxu0 0.0
    %1347 = vmatprep.subr.mxu0 0.0
    %1348 = vmatpush1.msra.mxu0 0.0
    %1349 = vmatprep.subr.mxu0 0.0
    %1350 = vmatpush1.msra.mxu0 0.0
    %1351 = vmatprep.subr.mxu0 0.0
    %1352 = vmatpush1.msra.mxu0 0.0
    %1353 = vmatprep.subr.mxu0 %v1299
    %1354 = vmatpush1.msra.mxu0 %v1297
    %1355 = vmatprep.subr.mxu0 %v1293
    %1356 = vmatpush1.msra.mxu0 %v1291
    %1357 = vmatprep.subr.mxu0 %v1287
    %1358 = vmatpush1.msra.mxu0 %v1285
    %1359 = vmatprep.subr.mxu0 %v1281
    %1360 = vmatpush1.msra.mxu0 %v1279
    %1361 = vmatprep.subr.mxu0 0.0
    %1362 = vmatpush2.msra.mxu0 0.0
    %1363 = vmatprep.subr.mxu0 0.0
    %1364 = vmatpush2.msra.mxu0 0.0
    %1365 = vmatprep.subr.mxu0 0.0
    %1366 = vmatpush2.msra.mxu0 0.0
    %1367 = vmatprep.subr.mxu0 0.0
    %1368 = vmatpush2.msra.mxu0 0.0
    %1369 = vmatprep.subr.mxu0 0.0
    %1370 = vmatpush2.msra.mxu0 0.0
    %1371 = vmatprep.subr.mxu0 0.0
    %1372 = vmatpush2.msra.mxu0 0.0
    %1373 = vmatprep.subr.mxu0 0.0
    %1374 = vmatpush2.msra.mxu0 0.0
    %1375 = vmatprep.subr.mxu0 0.0
    %1376 = vmatpush2.msra.mxu0 0.0
    %1377 = vmatprep.subr.mxu0 0.0
    %1378 = vmatpush2.msra.mxu0 0.0
    %1379 = vmatprep.subr.mxu0 0.0
    %1380 = vmatpush2.msra.mxu0 0.0
    %1381 = vmatprep.subr.mxu0 0.0
    %1382 = vmatpush2.msra.mxu0 0.0
    %1383 = vmatprep.subr.mxu0 0.0
    %1384 = vmatpush2.msra.mxu0 0.0
    %1385 = vmatprep.subr.mxu0 0.0
    %1386 = vmatpush2.msra.mxu0 0.0
    %1387 = vmatprep.subr.mxu0 0.0
    %1388 = vmatpush2.msra.mxu0 0.0
    %1389 = vmatprep.subr.mxu0 0.0
    %1390 = vmatpush2.msra.mxu0 0.0
    %1391 = vmatprep.subr.mxu0 0.0
    %1392 = vmatpush2.msra.mxu0 0.0
    %1393 = vmatprep.mubr.f32.mxu0 0.0
    %1394 = vmatmul.mubr.f32.gmra.mxu0 %v1325
    %v1395 = vpop.f32.mrf.mxu0
    %v1396 = vadd.f32 %v1322, %v1395
    %v1397 = vpop.f32.mrf.mxu0
    %v1398 = vadd.f32 %v1322, %v1397
    %1399 = vmatprep.mubr.f32.mxu0 0.0
    %1400 = vmatmul.mubr.f32.gmra.mxu0 %v1327
    %v1401 = vpop.f32.mrf.mxu0
    %v1402 = vadd.f32 %v1321, %v1401
    %v1403 = vpop.f32.mrf.mxu0
    %v1404 = vadd.f32 %v1321, %v1403
    %1405 = vdwg.mxu0
    %v1406 = vsel %vm343, %v1402, -inf
    %v1407 = vmax.f32 %v1396, %v1406
    %v1408 = vrot.slane %v1407, 4
    %v1409 = vmax.f32 %v1407, %v1408
    %v1410 = vrot.slane %v1409, 2
    %v1411 = vmax.f32 %v1409, %v1410
    %v1412 = vrot.slane %v1411, 1
    %v1413 = vmax.f32 %v1411, %v1412
    %v1414 = vsel %vm343, %v1404, -inf
    %v1415 = vmax.f32 %v1398, %v1414
    %v1416 = vrot.slane %v1415, 4
    %v1417 = vmax.f32 %v1415, %v1416
    %v1418 = vrot.slane %v1417, 2
    %v1419 = vmax.f32 %v1417, %v1418
    %v1420 = vrot.slane %v1419, 1
    %v1421 = vmax.f32 %v1419, %v1420
    %v1422 = vsub.f32 %v1396, %v1413
    %v1423 = vsub.f32 %v1398, %v1421
    %v1424 = vsub.f32 %v1402, %v1413
    %v1425 = vsub.f32 %v1404, %v1421
    %v1426 = vmul.f32 %v1422, 1.442695
    %v1427 = vpow.pop %v1426
    %v1428 = vmul.f32 %v1423, 1.442695
    %v1429 = vpow.pop %v1428
    %v1430 = vmul.f32 %v1424, 1.442695
    %v1431 = vpow.pop %v1430
    %v1432 = vmul.f32 %v1425, 1.442695
    %v1433 = vpow.pop %v1432
    %v1434 = vsel %vm343, %v1431, 0.0
    %v1435 = vadd.f32 %v1427, %v1434
    %v1436 = vrot.slane %v1435, 4
    %v1437 = vadd.f32 %v1435, %v1436
    %v1438 = vrot.slane %v1437, 2
    %v1439 = vadd.f32 %v1437, %v1438
    %v1440 = vrot.slane %v1439, 1
    %v1441 = vadd.f32 %v1439, %v1440
    %v1442 = vsel %vm343, %v1433, 0.0
    %v1443 = vadd.f32 %v1429, %v1442
    %v1444 = vrot.slane %v1443, 4
    %v1445 = vadd.f32 %v1443, %v1444
    %v1446 = vrot.slane %v1445, 2
    %v1447 = vadd.f32 %v1445, %v1446
    %v1448 = vrot.slane %v1447, 1
    %v1449 = vadd.f32 %v1447, %v1448
    %v1450 = vrcp.pop %v1441
    %v1451 = vrcp.pop %v1449
    %v1452 = vmul.f32 %v1427, %v1450
    %v1453 = vmul.f32 %v1429, %v1451
    %v1454 = vmul.f32 %v1431, %v1450
    %v1455 = vmul.f32 %v1433, %v1451
    %1456 = vrot.lane.b32.xlu0 %v1317, 96
    %v1457 = vpop.permute.xlu0 %1456
    %1458 = vrot.lane.b32.xlu0 %v1316, 96
    %v1459 = vpop.permute.xlu0 %1458
    %v1460 = vsel %vm352, %v1457, 0
    %v1462 = vsel %vm352, %v1459, 0
    %1464 = vmatprep.subr.mxu0 0.0
    %1465 = vmatpush1.xpose.msra.mxu0 0.0
    %1466 = vmatprep.subr.mxu0 0.0
    %1467 = vmatpush1.xpose.msra.mxu0 0.0
    %1468 = vmatprep.subr.mxu0 0.0
    %1469 = vmatpush1.xpose.msra.mxu0 0.0
    %1470 = vmatprep.subr.mxu0 0.0
    %1471 = vmatpush1.xpose.msra.mxu0 0.0
    %1472 = vmatprep.subr.mxu0 0.0
    %1473 = vmatpush1.xpose.msra.mxu0 0.0
    %1474 = vmatprep.subr.mxu0 0.0
    %1475 = vmatpush1.xpose.msra.mxu0 0.0
    %1476 = vmatprep.subr.mxu0 0.0
    %1477 = vmatpush1.xpose.msra.mxu0 0.0
    %1478 = vmatprep.subr.mxu0 0.0
    %1479 = vmatpush1.xpose.msra.mxu0 0.0
    %1480 = vmatprep.subr.mxu0 0.0
    %1481 = vmatpush1.xpose.msra.mxu0 0.0
    %1482 = vmatprep.subr.mxu0 0.0
    %1483 = vmatpush1.xpose.msra.mxu0 0.0
    %1484 = vmatprep.subr.mxu0 0.0
    %1485 = vmatpush1.xpose.msra.mxu0 0.0
    %1486 = vmatprep.subr.mxu0 0.0
    %1487 = vmatpush1.xpose.msra.mxu0 0.0
    %1488 = vmatprep.subr.mxu0 0.0
    %1489 = vmatpush1.xpose.msra.mxu0 0.0
    %1490 = vmatprep.subr.mxu0 0.0
    %1491 = vmatpush1.xpose.msra.mxu0 0.0
    %1492 = vmatprep.subr.mxu0 0.0
    %1493 = vmatpush1.xpose.msra.mxu0 %v1462
    %1494 = vmatprep.subr.mxu0 0.0
    %1495 = vmatpush1.xpose.msra.mxu0 %v1460
    %1496 = vmatprep.subr.mxu0 0.0
    %1497 = vmatpush2.xpose.msra.mxu0 0.0
    %1498 = vmatprep.subr.mxu0 0.0
    %1499 = vmatpush2.xpose.msra.mxu0 0.0
    %1500 = vmatprep.subr.mxu0 0.0
    %1501 = vmatpush2.xpose.msra.mxu0 0.0
    %1502 = vmatprep.subr.mxu0 0.0
    %1503 = vmatpush2.xpose.msra.mxu0 0.0
    %1504 = vmatprep.subr.mxu0 0.0
    %1505 = vmatpush2.xpose.msra.mxu0 0.0
    %1506 = vmatprep.subr.mxu0 0.0
    %1507 = vmatpush2.xpose.msra.mxu0 0.0
    %1508 = vmatprep.subr.mxu0 0.0
    %1509 = vmatpush2.xpose.msra.mxu0 0.0
    %1510 = vmatprep.subr.mxu0 0.0
    %1511 = vmatpush2.xpose.msra.mxu0 0.0
    %1512 = vmatprep.subr.mxu0 0.0
    %1513 = vmatpush2.xpose.msra.mxu0 0.0
    %1514 = vmatprep.subr.mxu0 0.0
    %1515 = vmatpush2.xpose.msra.mxu0 0.0
    %1516 = vmatprep.subr.mxu0 0.0
    %1517 = vmatpush2.xpose.msra.mxu0 0.0
    %1518 = vmatprep.subr.mxu0 0.0
    %1519 = vmatpush2.xpose.msra.mxu0 0.0
    %1520 = vmatprep.subr.mxu0 0.0
    %1521 = vmatpush2.xpose.msra.mxu0 0.0
    %1522 = vmatprep.subr.mxu0 0.0
    %1523 = vmatpush2.xpose.msra.mxu0 0.0
    %1524 = vmatprep.subr.mxu0 0.0
    %1525 = vmatpush2.xpose.msra.mxu0 0.0
    %1526 = vmatprep.subr.mxu0 0.0
    %1527 = vmatpush2.xpose.msra.mxu0 0.0
    %1528 = vmatprep.mubr.f32.mxu0 0.0
    %1529 = vmatmul.mubr.f32.gmra.mxu0 %v594
    %v1530 = vpop.f32.mrf.mxu0
    %v1531 = vadd.f32 0.0, %v1530
    %v1532 = vpop.f32.mrf.mxu0
    %1533 = vdwg.mxu0
    %v1535 = vsel %vm1032, %v1531, 0
    %v1538 = vsel %vm343, %v1454, 0
    %v1541 = vsel %vm343, %v1455, 0
    %1543 = vmatprep.subr.mxu0 0.0
    %1544 = vmatpush1.msra.mxu0 0.0
    %1545 = vmatprep.subr.mxu0 0.0
    %1546 = vmatpush1.msra.mxu0 0.0
    %1547 = vmatprep.subr.mxu0 0.0
    %1548 = vmatpush1.msra.mxu0 0.0
    %1549 = vmatprep.subr.mxu0 0.0
    %1550 = vmatpush1.msra.mxu0 0.0
    %1551 = vmatprep.subr.mxu0 0.0
    %1552 = vmatpush1.msra.mxu0 0.0
    %1553 = vmatprep.subr.mxu0 0.0
    %1554 = vmatpush1.msra.mxu0 0.0
    %1555 = vmatprep.subr.mxu0 0.0
    %1556 = vmatpush1.msra.mxu0 0.0
    %1557 = vmatprep.subr.mxu0 0.0
    %1558 = vmatpush1.msra.mxu0 0.0
    %1559 = vmatprep.subr.mxu0 0.0
    %1560 = vmatpush1.msra.mxu0 0.0
    %1561 = vmatprep.subr.mxu0 0.0
    %1562 = vmatpush1.msra.mxu0 0.0
    %1563 = vmatprep.subr.mxu0 0.0
    %1564 = vmatpush1.msra.mxu0 0.0
    %1565 = vmatprep.subr.mxu0 0.0
    %1566 = vmatpush1.msra.mxu0 0.0
    %1567 = vmatprep.subr.mxu0 0.0
    %1568 = vmatpush1.msra.mxu0 0.0
    %1569 = vmatprep.subr.mxu0 0.0
    %1570 = vmatpush1.msra.mxu0 0.0
    %1571 = vmatprep.subr.mxu0 %v1541
    %1572 = vmatpush1.msra.mxu0 %v1538
    %1573 = vmatprep.subr.mxu0 %v1453
    %1574 = vmatpush1.msra.mxu0 %v1452
    %1575 = vmatprep.subr.mxu0 0.0
    %1576 = vmatpush2.msra.mxu0 0.0
    %1577 = vmatprep.subr.mxu0 0.0
    %1578 = vmatpush2.msra.mxu0 0.0
    %1579 = vmatprep.subr.mxu0 0.0
    %1580 = vmatpush2.msra.mxu0 0.0
    %1581 = vmatprep.subr.mxu0 0.0
    %1582 = vmatpush2.msra.mxu0 0.0
    %1583 = vmatprep.subr.mxu0 0.0
    %1584 = vmatpush2.msra.mxu0 0.0
    %1585 = vmatprep.subr.mxu0 0.0
    %1586 = vmatpush2.msra.mxu0 0.0
    %1587 = vmatprep.subr.mxu0 0.0
    %1588 = vmatpush2.msra.mxu0 0.0
    %1589 = vmatprep.subr.mxu0 0.0
    %1590 = vmatpush2.msra.mxu0 0.0
    %1591 = vmatprep.subr.mxu0 0.0
    %1592 = vmatpush2.msra.mxu0 0.0
    %1593 = vmatprep.subr.mxu0 0.0
    %1594 = vmatpush2.msra.mxu0 0.0
    %1595 = vmatprep.subr.mxu0 0.0
    %1596 = vmatpush2.msra.mxu0 0.0
    %1597 = vmatprep.subr.mxu0 0.0
    %1598 = vmatpush2.msra.mxu0 0.0
    %1599 = vmatprep.subr.mxu0 0.0
    %1600 = vmatpush2.msra.mxu0 0.0
    %1601 = vmatprep.subr.mxu0 0.0
    %1602 = vmatpush2.msra.mxu0 0.0
    %1603 = vmatprep.subr.mxu0 0.0
    %1604 = vmatpush2.msra.mxu0 0.0
    %1605 = vmatprep.subr.mxu0 0.0
    %1606 = vmatpush2.msra.mxu0 0.0
    %1607 = vmatprep.mubr.f32.mxu0 0.0
    %1608 = vmatmul.mubr.f32.gmra.mxu0 %v1535
    %v1609 = vpop.f32.mrf.mxu0
    %v1610 = vadd.f32 0.0, %v1609
    %v1611 = vpop.f32.mrf.mxu0
    %v1612 = vadd.f32 0.0, %v1611
    %1613 = vdwg.mxu0
    %1614 = vmatprep.subr.mxu0 0.0
    %1615 = vmatpush1.msra.mxu0 0.0
    %1616 = vmatprep.subr.mxu0 0.0
    %1617 = vmatpush1.msra.mxu0 0.0
    %1618 = vmatprep.subr.mxu0 0.0
    %1619 = vmatpush1.msra.mxu0 0.0
    %1620 = vmatprep.subr.mxu0 0.0
    %1621 = vmatpush1.msra.mxu0 0.0
    %1622 = vmatprep.subr.mxu0 0.0
    %1623 = vmatpush1.msra.mxu0 0.0
    %1624 = vmatprep.subr.mxu0 0.0
    %1625 = vmatpush1.msra.mxu0 0.0
    %1626 = vmatprep.subr.mxu0 0.0
    %1627 = vmatpush1.msra.mxu0 0.0
    %1628 = vmatprep.subr.mxu0 0.0
    %1629 = vmatpush1.msra.mxu0 0.0
    %1630 = vmatprep.subr.mxu0 0.0
    %1631 = vmatpush1.msra.mxu0 0.0
    %1632 = vmatprep.subr.mxu0 0.0
    %1633 = vmatpush1.msra.mxu0 0.0
    %1634 = vmatprep.subr.mxu0 0.0
    %1635 = vmatpush1.msra.mxu0 0.0
    %1636 = vmatprep.subr.mxu0 0.0
    %1637 = vmatpush1.msra.mxu0 0.0
    %1638 = vmatprep.subr.mxu0 0.0
    %1639 = vmatpush1.msra.mxu0 0.0
    %1640 = vmatprep.subr.mxu0 0.0
    %1641 = vmatpush1.msra.mxu0 0.0
    %1642 = vmatprep.subr.mxu0 0.0
    %1643 = vmatpush1.msra.mxu0 0.0
    %1644 = vmatprep.subr.mxu0 %v1210
    %1645 = vmatpush1.msra.mxu0 %v1208
    %1646 = vmatprep.subr.mxu0 0.0
    %1647 = vmatpush2.msra.mxu0 0.0
    %1648 = vmatprep.subr.mxu0 0.0
    %1649 = vmatpush2.msra.mxu0 0.0
    %1650 = vmatprep.subr.mxu0 0.0
    %1651 = vmatpush2.msra.mxu0 0.0
    %1652 = vmatprep.subr.mxu0 0.0
    %1653 = vmatpush2.msra.mxu0 0.0
    %1654 = vmatprep.subr.mxu0 0.0
    %1655 = vmatpush2.msra.mxu0 0.0
    %1656 = vmatprep.subr.mxu0 0.0
    %1657 = vmatpush2.msra.mxu0 0.0
    %1658 = vmatprep.subr.mxu0 0.0
    %1659 = vmatpush2.msra.mxu0 0.0
    %1660 = vmatprep.subr.mxu0 0.0
    %1661 = vmatpush2.msra.mxu0 0.0
    %1662 = vmatprep.subr.mxu0 0.0
    %1663 = vmatpush2.msra.mxu0 0.0
    %1664 = vmatprep.subr.mxu0 0.0
    %1665 = vmatpush2.msra.mxu0 0.0
    %1666 = vmatprep.subr.mxu0 0.0
    %1667 = vmatpush2.msra.mxu0 0.0
    %1668 = vmatprep.subr.mxu0 0.0
    %1669 = vmatpush2.msra.mxu0 0.0
    %1670 = vmatprep.subr.mxu0 0.0
    %1671 = vmatpush2.msra.mxu0 0.0
    %1672 = vmatprep.subr.mxu0 0.0
    %1673 = vmatpush2.msra.mxu0 0.0
    %1674 = vmatprep.subr.mxu0 0.0
    %1675 = vmatpush2.msra.mxu0 0.0
    %1676 = vmatprep.subr.mxu0 0.0
    %1677 = vmatpush2.msra.mxu0 0.0
    %1678 = vmatprep.mubr.f32.mxu0 0.0
    %1679 = vmatmul.mubr.f32.gmra.mxu0 %v1116
    %v1680 = vpop.f32.mrf.mxu0
    %v1681 = vadd.f32 %v1610, %v1680
    %v1682 = vpop.f32.mrf.mxu0
    %v1683 = vadd.f32 %v1612, %v1682
    %1684 = vdwg.mxu0
    %1685 = vset.pattern.permute.xlu0 1
    %1686 = vperm.xlu0 %1685, %v663
    %v1687 = vpop.permute.xlu0 %1686
    %v1689 = vadd.f32 %v1681, %v1687
    %v1690 = vadd.f32 %v1683, %v1687
    %v1691 = vadd.f32 %v1689, %v1198
    %v1692 = vadd.f32 %v1690, %v1198
    %v1695 = vrot.slane %v1691, 4
    %v1696 = vrot.slane %v1692, 4
    %v1699 = vsel %vm343, %v1200, %v1695
    %v1700 = vsel %vm343, %v1201, %v1696
    %1701 = vst [vmem:[%s4] sm:$0xff] %v1699
    %1702 = vst [vmem:[%s4 + $0x8] sm:$0xff] %v1700
    // Predicated region
    $region22: #{ip_adapter_forward.1} parent=1 // pred_check
      _
    $region23: #{ip_adapter_forward.1} parent=1 // pred_check_branch
      %1704 = sbr.rel (0) target = $region25
    $region24: #{ip_adapter_forward.1} parent=1 // pred_region
      _
    $region25: #{ip_adapter_forward.1} parent=1 // pred_fallthru
      _
    // Predicated region
    $region26: #{ip_adapter_forward.1} parent=1 // pred_check
      _
    $region27: #{ip_adapter_forward.1} parent=1 // pred_check_branch
      %1706 = sbr.rel (0) target = $region29
    $region28: #{ip_adapter_forward.1} parent=1 // pred_region
      _
    $region29: #{ip_adapter_forward.1} parent=1 // pred_fallthru
      _
    %1707 = vsyncpa [#allocation3], 1

</llo_original>
